<compile_context>
chip_gen: v7x
topology: tpu7x:2x2x1
jax: 0.10.0
libtpu: 0.0.40
codegen_flags: <defaults>
</compile_context>

<pallas_src>
import jax
import jax.numpy as jnp
from jax.experimental import pallas as pl
from jax.experimental.pallas import tpu as pltpu  # noqa: F401  (kept for TPU-specific tuning hooks)

EPS = 1e-5


def bn_add_kernel(x_ref, r_ref, gb_ref, o_ref):
    # x_ref, r_ref, o_ref: (C, L) in VMEM; gb_ref: (C, 2) packed [gamma | beta]
    x = x_ref[...]
    L = x.shape[1]
    inv_L = 1.0 / L

    # Two-pass batch statistics (biased variance over N,H,W per channel).
    mean = jnp.sum(x, axis=1, keepdims=True) * inv_L
    xc = x - mean
    var = jnp.sum(xc * xc, axis=1, keepdims=True) * inv_L
    inv_std = jax.lax.rsqrt(var + EPS)

    gamma = gb_ref[:, 0:1]
    beta = gb_ref[:, 1:2]

    # y = gamma * (x - mean) * inv_std + beta ; out = residual + y
    a = gamma * inv_std
    o_ref[...] = r_ref[...] + a * xc + beta


def pack_affine(gamma, beta):
    """Pack gamma/beta into one (C, 2) array. Do this once, outside the hot path."""
    return jnp.stack([gamma, beta], axis=1)


def batchnorm_add(x156, x149, gb):
    """x156, x149: (N, C, H, W) float32; gb: (C, 2) packed [gamma | beta]."""
    N, C, H, W = x156.shape
    L = N * H * W

    if N == 1:
        # Free view: NCHW with N=1 is already (C, H*W) contiguous.
        x2d = x156.reshape(C, L)
        r2d = x149.reshape(C, L)
    else:
        # Rarely-used fallback for N > 1 (pays real transposes).
        x2d = jnp.transpose(x156, (1, 0, 2, 3)).reshape(C, L)
        r2d = jnp.transpose(x149, (1, 0, 2, 3)).reshape(C, L)

    cost = pl.CostEstimate(
        flops=6 * C * L,            # reduce + center + square-reduce + scale/shift + add
        transcendentals=C,          # one rsqrt per channel
        bytes_accessed=3 * C * L * 4 + 2 * C * 4,
    )

    # Single whole-array invocation: no grid, whole blocks resident in VMEM.
    out2d = pl.pallas_call(
        bn_add_kernel,
        out_shape=jax.ShapeDtypeStruct((C, L), x156.dtype),
        cost_estimate=cost,
    )(x2d, r2d, gb)

    if N == 1:
        return out2d.reshape(N, C, H, W)
    return jnp.transpose(out2d.reshape(C, N, H, W), (1, 0, 2, 3))


def reference(x156, x149, gamma, beta):
    mean = jnp.mean(x156, axis=(0, 2, 3), keepdims=True)
    var = jnp.mean((x156 - mean) ** 2, axis=(0, 2, 3), keepdims=True)
    y = (x156 - mean) / jnp.sqrt(var + EPS)
    y = gamma.reshape(1, -1, 1, 1) * y + beta.reshape(1, -1, 1, 1)
    return x149 + y


if __name__ == "__main__":
    key = jax.random.PRNGKey(0)
    k1, k2, k3, k4 = jax.random.split(key, 4)

    N, C, H, W = 1, 432, 14, 14
    x156 = jax.random.normal(k1, (N, C, H, W), dtype=jnp.float32)
    x149 = jax.random.normal(k2, (N, C, H, W), dtype=jnp.float32)
    # PyTorch default init is gamma=1, beta=0; use non-trivial values so the
    # affine path is actually exercised.
    gamma = 1.0 + 0.1 * jax.random.normal(k3, (C,), dtype=jnp.float32)
    beta = 0.1 * jax.random.normal(k4, (C,), dtype=jnp.float32)

    # Precompute the packed affine params once (hoisted out of the hot path).
    gb = pack_affine(gamma, beta)
    gb = jax.block_until_ready(gb)

    out = batchnorm_add(x156, x149, gb)
    jax.block_until_ready(out)

    ref = reference(x156, x149, gamma, beta)
    assert out.shape == (N, C, H, W)
    assert jnp.allclose(out, ref, atol=1e-4, rtol=1e-4), "mismatch vs reference"

    # TODO(synk): training-mode BatchNorm2d also updates running_mean/var with
    # momentum=0.1 (unbiased var); module state update is not part of the
    # forward output implemented here.

    print("KERNEL_OK")
</pallas_src>

<mosaic_0001>
module attributes {stable_mosaic.version = 11 : i64} {
  func.func @bn_add_kernel(%arg0: memref<432x196xf32, #tpu.memory_space<vmem>>, %arg1: memref<432x196xf32, #tpu.memory_space<vmem>>, %arg2: memref<432x2xf32, #tpu.memory_space<vmem>>, %arg3: memref<432x196xf32, #tpu.memory_space<vmem>>) attributes {dimension_semantics = [], scalar_prefetch = 0 : i64, scratch_operands = 0 : i64, tpu.core_type = #tpu.core_type<tc>} {
    %c0 = arith.constant 0 : index
    %c0_0 = arith.constant 0 : index
    %0 = vector.load %arg0[%c0, %c0_0] : memref<432x196xf32, #tpu.memory_space<vmem>>, vector<432x196xf32>
    %cst = arith.constant dense<0.000000e+00> : vector<432xf32>
    %1 = vector.multi_reduction <add>, %0, %cst [1] : vector<432x196xf32> to vector<432xf32>
    %2 = vector.shape_cast %1 : vector<432xf32> to vector<432x1xf32>
    %cst_1 = arith.constant 0.00510204071 : f32
    %3 = vector.broadcast %cst_1 : f32 to vector<432x1xf32>
    %4 = arith.mulf %2, %3 : vector<432x1xf32>
    %5 = vector.broadcast %4 : vector<432x1xf32> to vector<432x196xf32>
    %6 = arith.subf %0, %5 : vector<432x196xf32>
    %7 = arith.mulf %6, %6 : vector<432x196xf32>
    %cst_2 = arith.constant dense<0.000000e+00> : vector<432xf32>
    %8 = vector.multi_reduction <add>, %7, %cst_2 [1] : vector<432x196xf32> to vector<432xf32>
    %9 = vector.shape_cast %8 : vector<432xf32> to vector<432x1xf32>
    %cst_3 = arith.constant 0.00510204071 : f32
    %10 = vector.broadcast %cst_3 : f32 to vector<432x1xf32>
    %11 = arith.mulf %9, %10 : vector<432x1xf32>
    %cst_4 = arith.constant 9.99999974E-6 : f32
    %12 = vector.broadcast %cst_4 : f32 to vector<432x1xf32>
    %13 = arith.addf %11, %12 : vector<432x1xf32>
    %14 = math.rsqrt %13 : vector<432x1xf32>
    %c0_5 = arith.constant 0 : index
    %c0_6 = arith.constant 0 : index
    %15 = vector.load %arg2[%c0_5, %c0_6] : memref<432x2xf32, #tpu.memory_space<vmem>>, vector<432x1xf32>
    %c0_7 = arith.constant 0 : index
    %c1 = arith.constant 1 : index
    %16 = vector.load %arg2[%c0_7, %c1] : memref<432x2xf32, #tpu.memory_space<vmem>>, vector<432x1xf32>
    %17 = arith.mulf %15, %14 : vector<432x1xf32>
    %c0_8 = arith.constant 0 : index
    %c0_9 = arith.constant 0 : index
    %18 = vector.load %arg1[%c0_8, %c0_9] : memref<432x196xf32, #tpu.memory_space<vmem>>, vector<432x196xf32>
    %19 = vector.broadcast %17 : vector<432x1xf32> to vector<432x196xf32>
    %20 = arith.mulf %19, %6 : vector<432x196xf32>
    %21 = arith.addf %18, %20 : vector<432x196xf32>
    %22 = vector.broadcast %16 : vector<432x1xf32> to vector<432x196xf32>
    %23 = arith.addf %21, %22 : vector<432x196xf32>
    %c0_10 = arith.constant 0 : index
    %c0_11 = arith.constant 0 : index
    %24 = vector.load %arg3[%c0_10, %c0_11] : memref<432x196xf32, #tpu.memory_space<vmem>>, vector<432x196xf32>
    tpu.vector_store %arg3[%c0_10, %c0_11], %23 {strides = array<i32>} : memref<432x196xf32, #tpu.memory_space<vmem>>, vector<432x196xf32>,
    return
  }
}

</mosaic_0001>

<llo_original>
// kernel: tpu_custom_call.1
$region0: #{tpu_custom_call.1}
  #allocation0 [shape = 'u32[]', space=smem, size = 0x4, offset = 0x4, fixed_abs, tag = 'smem constant byte address 0x4 - core index']
  #allocation1 [shape = 'u32[144,128]{1,0:T(1,128)}', space=vmem, size = 0x12000, scoped, tag = 'internal scratch']
  %s0 = inlined_call_operand.vmem [shape: f32[432,196], index: 0, kind: input, shape index: {}]
  %s1 = inlined_call_operand.vmem [shape: f32[432,196], index: 1, kind: input, shape index: {}]
  %s2 = inlined_call_operand.vmem [shape: f32[432,2], index: 2, kind: input, shape index: {}]
  %s3 = inlined_call_operand.vmem [shape: f32[432,196], index: 3, kind: output, shape index: {}]
  %s4 = sld [smem:[#allocation0]]
  $region22: #{tpu_custom_call.1} parent=0
    _
  %s6 = ssub.s32 1, %s4
  %s7 = scalar_select 0, %s6, %s4
  // Predicated region
  $region2: #{tpu_custom_call.1} parent=0 // pred_check
    _
  $region3: #{tpu_custom_call.1} parent=0 // pred_check_branch
    %9 = sbr.rel (0) target = $region5
  $region4: #{tpu_custom_call.1} parent=0 // pred_region
    _
  $region5: #{tpu_custom_call.1} parent=0 // pred_fallthru
    _
  // Predicated region
  $region6: #{tpu_custom_call.1} parent=0 // pred_check
    _
  $region7: #{tpu_custom_call.1} parent=0 // pred_check_branch
    %11 = sbr.rel (0) target = $region9
  $region8: #{tpu_custom_call.1} parent=0 // pred_region
    _
  $region9: #{tpu_custom_call.1} parent=0 // pred_fallthru
    _
  // Predicated region
  $region10: #{tpu_custom_call.1} parent=0 // pred_check
    _
  $region11: #{tpu_custom_call.1} parent=0 // pred_check_branch
    %13 = sbr.rel (0) target = $region13
  $region12: #{tpu_custom_call.1} parent=0 // pred_region
    _
  $region13: #{tpu_custom_call.1} parent=0 // pred_fallthru
    _
  %v14 = vld [vmem:[%s0] sm:$0xff]
  %v15 = vld [vmem:[%s0 + $0x8] sm:$0xff]
  %v16 = vld [vmem:[%s0 + $0x10] sm:$0xff]
  %v17 = vld [vmem:[%s0 + $0x18] sm:$0xff]
  %v18 = vld [vmem:[%s0 + $0x20] sm:$0xff]
  %v19 = vld [vmem:[%s0 + $0x28] sm:$0xff]
  %v20 = vld [vmem:[%s0 + $0x30] sm:$0xff]
  %v21 = vld [vmem:[%s0 + $0x38] sm:$0xff]
  %v22 = vld [vmem:[%s0 + $0x40] sm:$0xff]
  %v23 = vld [vmem:[%s0 + $0x48] sm:$0xff]
  %v24 = vld [vmem:[%s0 + $0x50] sm:$0xff]
  %v25 = vld [vmem:[%s0 + $0x58] sm:$0xff]
  %v26 = vld [vmem:[%s0 + $0x60] sm:$0xff]
  %v27 = vld [vmem:[%s0 + $0x68] sm:$0xff]
  %v28 = vld [vmem:[%s0 + $0x70] sm:$0xff]
  %v29 = vld [vmem:[%s0 + $0x78] sm:$0xff]
  %v30 = vld [vmem:[%s0 + $0x80] sm:$0xff]
  %v31 = vld [vmem:[%s0 + $0x88] sm:$0xff]
  %v32 = vld [vmem:[%s0 + $0x90] sm:$0xff]
  %v33 = vld [vmem:[%s0 + $0x98] sm:$0xff]
  %v34 = vld [vmem:[%s0 + $0xa0] sm:$0xff]
  %v35 = vld [vmem:[%s0 + $0xa8] sm:$0xff]
  %v36 = vld [vmem:[%s0 + $0xb0] sm:$0xff]
  %v37 = vld [vmem:[%s0 + $0xb8] sm:$0xff]
  %v38 = vld [vmem:[%s0 + $0xc0] sm:$0xff]
  %v39 = vld [vmem:[%s0 + $0xc8] sm:$0xff]
  %v40 = vld [vmem:[%s0 + $0xd0] sm:$0xff]
  %v41 = vld [vmem:[%s0 + $0xd8] sm:$0xff]
  %v42 = vld [vmem:[%s0 + $0xe0] sm:$0xff]
  %v43 = vld [vmem:[%s0 + $0xe8] sm:$0xff]
  %v44 = vld [vmem:[%s0 + $0xf0] sm:$0xff]
  %v45 = vld [vmem:[%s0 + $0xf8] sm:$0xff]
  %v46 = vld [vmem:[%s0 + $0x100] sm:$0xff]
  %v47 = vld [vmem:[%s0 + $0x108] sm:$0xff]
  %v48 = vld [vmem:[%s0 + $0x110] sm:$0xff]
  %v49 = vld [vmem:[%s0 + $0x118] sm:$0xff]
  %v50 = vld [vmem:[%s0 + $0x120] sm:$0xff]
  %v51 = vld [vmem:[%s0 + $0x128] sm:$0xff]
  %v52 = vld [vmem:[%s0 + $0x130] sm:$0xff]
  %v53 = vld [vmem:[%s0 + $0x138] sm:$0xff]
  %v54 = vld [vmem:[%s0 + $0x140] sm:$0xff]
  %v55 = vld [vmem:[%s0 + $0x148] sm:$0xff]
  %v56 = vld [vmem:[%s0 + $0x150] sm:$0xff]
  %v57 = vld [vmem:[%s0 + $0x158] sm:$0xff]
  %v58 = vld [vmem:[%s0 + $0x160] sm:$0xff]
  %v59 = vld [vmem:[%s0 + $0x168] sm:$0xff]
  %v60 = vld [vmem:[%s0 + $0x170] sm:$0xff]
  %v61 = vld [vmem:[%s0 + $0x178] sm:$0xff]
  %v62 = vld [vmem:[%s0 + $0x180] sm:$0xff]
  %v63 = vld [vmem:[%s0 + $0x188] sm:$0xff]
  %v64 = vld [vmem:[%s0 + $0x190] sm:$0xff]
  %v65 = vld [vmem:[%s0 + $0x198] sm:$0xff]
  %v66 = vld [vmem:[%s0 + $0x1a0] sm:$0xff]
  %v67 = vld [vmem:[%s0 + $0x1a8] sm:$0xff]
  %v68 = vld [vmem:[%s0 + $0x1b0] sm:$0xff]
  %v69 = vld [vmem:[%s0 + $0x1b8] sm:$0xff]
  %v70 = vld [vmem:[%s0 + $0x1c0] sm:$0xff]
  %v71 = vld [vmem:[%s0 + $0x1c8] sm:$0xff]
  %v72 = vld [vmem:[%s0 + $0x1d0] sm:$0xff]
  %v73 = vld [vmem:[%s0 + $0x1d8] sm:$0xff]
  %v74 = vld [vmem:[%s0 + $0x1e0] sm:$0xff]
  %v75 = vld [vmem:[%s0 + $0x1e8] sm:$0xff]
  %v76 = vld [vmem:[%s0 + $0x1f0] sm:$0xff]
  %v77 = vld [vmem:[%s0 + $0x1f8] sm:$0xff]
  %v78 = vld [vmem:[%s0 + $0x200] sm:$0xff]
  %v79 = vld [vmem:[%s0 + $0x208] sm:$0xff]
  %v80 = vld [vmem:[%s0 + $0x210] sm:$0xff]
  %v81 = vld [vmem:[%s0 + $0x218] sm:$0xff]
  %v82 = vld [vmem:[%s0 + $0x220] sm:$0xff]
  %v83 = vld [vmem:[%s0 + $0x228] sm:$0xff]
  %v84 = vld [vmem:[%s0 + $0x230] sm:$0xff]
  %v85 = vld [vmem:[%s0 + $0x238] sm:$0xff]
  %v86 = vld [vmem:[%s0 + $0x240] sm:$0xff]
  %v87 = vld [vmem:[%s0 + $0x248] sm:$0xff]
  %v88 = vld [vmem:[%s0 + $0x250] sm:$0xff]
  %v89 = vld [vmem:[%s0 + $0x258] sm:$0xff]
  %v90 = vld [vmem:[%s0 + $0x260] sm:$0xff]
  %v91 = vld [vmem:[%s0 + $0x268] sm:$0xff]
  %v92 = vld [vmem:[%s0 + $0x270] sm:$0xff]
  %v93 = vld [vmem:[%s0 + $0x278] sm:$0xff]
  %v94 = vld [vmem:[%s0 + $0x280] sm:$0xff]
  %v95 = vld [vmem:[%s0 + $0x288] sm:$0xff]
  %v96 = vld [vmem:[%s0 + $0x290] sm:$0xff]
  %v97 = vld [vmem:[%s0 + $0x298] sm:$0xff]
  %v98 = vld [vmem:[%s0 + $0x2a0] sm:$0xff]
  %v99 = vld [vmem:[%s0 + $0x2a8] sm:$0xff]
  %v100 = vld [vmem:[%s0 + $0x2b0] sm:$0xff]
  %v101 = vld [vmem:[%s0 + $0x2b8] sm:$0xff]
  %v102 = vld [vmem:[%s0 + $0x2c0] sm:$0xff]
  %v103 = vld [vmem:[%s0 + $0x2c8] sm:$0xff]
  %v104 = vld [vmem:[%s0 + $0x2d0] sm:$0xff]
  %v105 = vld [vmem:[%s0 + $0x2d8] sm:$0xff]
  %v106 = vld [vmem:[%s0 + $0x2e0] sm:$0xff]
  %v107 = vld [vmem:[%s0 + $0x2e8] sm:$0xff]
  %v108 = vld [vmem:[%s0 + $0x2f0] sm:$0xff]
  %v109 = vld [vmem:[%s0 + $0x2f8] sm:$0xff]
  %v110 = vld [vmem:[%s0 + $0x300] sm:$0xff]
  %v111 = vld [vmem:[%s0 + $0x308] sm:$0xff]
  %v112 = vld [vmem:[%s0 + $0x310] sm:$0xff]
  %v113 = vld [vmem:[%s0 + $0x318] sm:$0xff]
  %v114 = vld [vmem:[%s0 + $0x320] sm:$0xff]
  %v115 = vld [vmem:[%s0 + $0x328] sm:$0xff]
  %v116 = vld [vmem:[%s0 + $0x330] sm:$0xff]
  %v117 = vld [vmem:[%s0 + $0x338] sm:$0xff]
  %v118 = vld [vmem:[%s0 + $0x340] sm:$0xff]
  %v119 = vld [vmem:[%s0 + $0x348] sm:$0xff]
  %v120 = vld [vmem:[%s0 + $0x350] sm:$0xff]
  %v121 = vld [vmem:[%s0 + $0x358] sm:$0xff]
  %vm122 = vcmask 556032
  %v123 = vsel %vm122, %v15, 0.0
  %v124 = vadd.f32 %v14, %v123
  %125 = vadd.xlane.f32.xlu0 %v124
  %v126 = vpop.xlane.xlu0 %125
  %v127 = vsel %vm122, %v17, 0.0
  %v128 = vadd.f32 %v16, %v127
  %129 = vadd.xlane.f32.xlu0 %v128
  %v130 = vpop.xlane.xlu0 %129
  %v131 = vsel %vm122, %v19, 0.0
  %v132 = vadd.f32 %v18, %v131
  %133 = vadd.xlane.f32.xlu0 %v132
  %v134 = vpop.xlane.xlu0 %133
  %v135 = vsel %vm122, %v21, 0.0
  %v136 = vadd.f32 %v20, %v135
  %137 = vadd.xlane.f32.xlu0 %v136
  %v138 = vpop.xlane.xlu0 %137
  %v139 = vsel %vm122, %v23, 0.0
  %v140 = vadd.f32 %v22, %v139
  %141 = vadd.xlane.f32.xlu0 %v140
  %v142 = vpop.xlane.xlu0 %141
  %v143 = vsel %vm122, %v25, 0.0
  %v144 = vadd.f32 %v24, %v143
  %145 = vadd.xlane.f32.xlu0 %v144
  %v146 = vpop.xlane.xlu0 %145
  %v147 = vsel %vm122, %v27, 0.0
  %v148 = vadd.f32 %v26, %v147
  %149 = vadd.xlane.f32.xlu0 %v148
  %v150 = vpop.xlane.xlu0 %149
  %v151 = vsel %vm122, %v29, 0.0
  %v152 = vadd.f32 %v28, %v151
  %153 = vadd.xlane.f32.xlu0 %v152
  %v154 = vpop.xlane.xlu0 %153
  %v155 = vsel %vm122, %v31, 0.0
  %v156 = vadd.f32 %v30, %v155
  %157 = vadd.xlane.f32.xlu0 %v156
  %v158 = vpop.xlane.xlu0 %157
  %v159 = vsel %vm122, %v33, 0.0
  %v160 = vadd.f32 %v32, %v159
  %161 = vadd.xlane.f32.xlu0 %v160
  %v162 = vpop.xlane.xlu0 %161
  %v163 = vsel %vm122, %v35, 0.0
  %v164 = vadd.f32 %v34, %v163
  %165 = vadd.xlane.f32.xlu0 %v164
  %v166 = vpop.xlane.xlu0 %165
  %v167 = vsel %vm122, %v37, 0.0
  %v168 = vadd.f32 %v36, %v167
  %169 = vadd.xlane.f32.xlu0 %v168
  %v170 = vpop.xlane.xlu0 %169
  %v171 = vsel %vm122, %v39, 0.0
  %v172 = vadd.f32 %v38, %v171
  %173 = vadd.xlane.f32.xlu0 %v172
  %v174 = vpop.xlane.xlu0 %173
  %v175 = vsel %vm122, %v41, 0.0
  %v176 = vadd.f32 %v40, %v175
  %177 = vadd.xlane.f32.xlu0 %v176
  %v178 = vpop.xlane.xlu0 %177
  %v179 = vsel %vm122, %v43, 0.0
  %v180 = vadd.f32 %v42, %v179
  %181 = vadd.xlane.f32.xlu0 %v180
  %v182 = vpop.xlane.xlu0 %181
  %v183 = vsel %vm122, %v45, 0.0
  %v184 = vadd.f32 %v44, %v183
  %185 = vadd.xlane.f32.xlu0 %v184
  %v186 = vpop.xlane.xlu0 %185
  %v187 = vsel %vm122, %v47, 0.0
  %v188 = vadd.f32 %v46, %v187
  %189 = vadd.xlane.f32.xlu0 %v188
  %v190 = vpop.xlane.xlu0 %189
  %v191 = vsel %vm122, %v49, 0.0
  %v192 = vadd.f32 %v48, %v191
  %193 = vadd.xlane.f32.xlu0 %v192
  %v194 = vpop.xlane.xlu0 %193
  %v195 = vsel %vm122, %v51, 0.0
  %v196 = vadd.f32 %v50, %v195
  %197 = vadd.xlane.f32.xlu0 %v196
  %v198 = vpop.xlane.xlu0 %197
  %v199 = vsel %vm122, %v53, 0.0
  %v200 = vadd.f32 %v52, %v199
  %201 = vadd.xlane.f32.xlu0 %v200
  %v202 = vpop.xlane.xlu0 %201
  %v203 = vsel %vm122, %v55, 0.0
  %v204 = vadd.f32 %v54, %v203
  %205 = vadd.xlane.f32.xlu0 %v204
  %v206 = vpop.xlane.xlu0 %205
  %v207 = vsel %vm122, %v57, 0.0
  %v208 = vadd.f32 %v56, %v207
  %209 = vadd.xlane.f32.xlu0 %v208
  %v210 = vpop.xlane.xlu0 %209
  %v211 = vsel %vm122, %v59, 0.0
  %v212 = vadd.f32 %v58, %v211
  %213 = vadd.xlane.f32.xlu0 %v212
  %v214 = vpop.xlane.xlu0 %213
  %v215 = vsel %vm122, %v61, 0.0
  %v216 = vadd.f32 %v60, %v215
  %217 = vadd.xlane.f32.xlu0 %v216
  %v218 = vpop.xlane.xlu0 %217
  %v219 = vsel %vm122, %v63, 0.0
  %v220 = vadd.f32 %v62, %v219
  %221 = vadd.xlane.f32.xlu0 %v220
  %v222 = vpop.xlane.xlu0 %221
  %v223 = vsel %vm122, %v65, 0.0
  %v224 = vadd.f32 %v64, %v223
  %225 = vadd.xlane.f32.xlu0 %v224
  %v226 = vpop.xlane.xlu0 %225
  %v227 = vsel %vm122, %v67, 0.0
  %v228 = vadd.f32 %v66, %v227
  %229 = vadd.xlane.f32.xlu0 %v228
  %v230 = vpop.xlane.xlu0 %229
  %v231 = vsel %vm122, %v69, 0.0
  %v232 = vadd.f32 %v68, %v231
  %233 = vadd.xlane.f32.xlu0 %v232
  %v234 = vpop.xlane.xlu0 %233
  %v235 = vsel %vm122, %v71, 0.0
  %v236 = vadd.f32 %v70, %v235
  %237 = vadd.xlane.f32.xlu0 %v236
  %v238 = vpop.xlane.xlu0 %237
  %v239 = vsel %vm122, %v73, 0.0
  %v240 = vadd.f32 %v72, %v239
  %241 = vadd.xlane.f32.xlu0 %v240
  %v242 = vpop.xlane.xlu0 %241
  %v243 = vsel %vm122, %v75, 0.0
  %v244 = vadd.f32 %v74, %v243
  %245 = vadd.xlane.f32.xlu0 %v244
  %v246 = vpop.xlane.xlu0 %245
  %v247 = vsel %vm122, %v77, 0.0
  %v248 = vadd.f32 %v76, %v247
  %249 = vadd.xlane.f32.xlu0 %v248
  %v250 = vpop.xlane.xlu0 %249
  %v251 = vsel %vm122, %v79, 0.0
  %v252 = vadd.f32 %v78, %v251
  %253 = vadd.xlane.f32.xlu0 %v252
  %v254 = vpop.xlane.xlu0 %253
  %v255 = vsel %vm122, %v81, 0.0
  %v256 = vadd.f32 %v80, %v255
  %257 = vadd.xlane.f32.xlu0 %v256
  %v258 = vpop.xlane.xlu0 %257
  %v259 = vsel %vm122, %v83, 0.0
  %v260 = vadd.f32 %v82, %v259
  %261 = vadd.xlane.f32.xlu0 %v260
  %v262 = vpop.xlane.xlu0 %261
  %v263 = vsel %vm122, %v85, 0.0
  %v264 = vadd.f32 %v84, %v263
  %265 = vadd.xlane.f32.xlu0 %v264
  %v266 = vpop.xlane.xlu0 %265
  %v267 = vsel %vm122, %v87, 0.0
  %v268 = vadd.f32 %v86, %v267
  %269 = vadd.xlane.f32.xlu0 %v268
  %v270 = vpop.xlane.xlu0 %269
  %v271 = vsel %vm122, %v89, 0.0
  %v272 = vadd.f32 %v88, %v271
  %273 = vadd.xlane.f32.xlu0 %v272
  %v274 = vpop.xlane.xlu0 %273
  %v275 = vsel %vm122, %v91, 0.0
  %v276 = vadd.f32 %v90, %v275
  %277 = vadd.xlane.f32.xlu0 %v276
  %v278 = vpop.xlane.xlu0 %277
  %v279 = vsel %vm122, %v93, 0.0
  %v280 = vadd.f32 %v92, %v279
  %281 = vadd.xlane.f32.xlu0 %v280
  %v282 = vpop.xlane.xlu0 %281
  %v283 = vsel %vm122, %v95, 0.0
  %v284 = vadd.f32 %v94, %v283
  %285 = vadd.xlane.f32.xlu0 %v284
  %v286 = vpop.xlane.xlu0 %285
  %v287 = vsel %vm122, %v97, 0.0
  %v288 = vadd.f32 %v96, %v287
  %289 = vadd.xlane.f32.xlu0 %v288
  %v290 = vpop.xlane.xlu0 %289
  %v291 = vsel %vm122, %v99, 0.0
  %v292 = vadd.f32 %v98, %v291
  %293 = vadd.xlane.f32.xlu0 %v292
  %v294 = vpop.xlane.xlu0 %293
  %v295 = vsel %vm122, %v101, 0.0
  %v296 = vadd.f32 %v100, %v295
  %297 = vadd.xlane.f32.xlu0 %v296
  %v298 = vpop.xlane.xlu0 %297
  %v299 = vsel %vm122, %v103, 0.0
  %v300 = vadd.f32 %v102, %v299
  %301 = vadd.xlane.f32.xlu0 %v300
  %v302 = vpop.xlane.xlu0 %301
  %v303 = vsel %vm122, %v105, 0.0
  %v304 = vadd.f32 %v104, %v303
  %305 = vadd.xlane.f32.xlu0 %v304
  %v306 = vpop.xlane.xlu0 %305
  %v307 = vsel %vm122, %v107, 0.0
  %v308 = vadd.f32 %v106, %v307
  %309 = vadd.xlane.f32.xlu0 %v308
  %v310 = vpop.xlane.xlu0 %309
  %v311 = vsel %vm122, %v109, 0.0
  %v312 = vadd.f32 %v108, %v311
  %313 = vadd.xlane.f32.xlu0 %v312
  %v314 = vpop.xlane.xlu0 %313
  %v315 = vsel %vm122, %v111, 0.0
  %v316 = vadd.f32 %v110, %v315
  %317 = vadd.xlane.f32.xlu0 %v316
  %v318 = vpop.xlane.xlu0 %317
  %v319 = vsel %vm122, %v113, 0.0
  %v320 = vadd.f32 %v112, %v319
  %321 = vadd.xlane.f32.xlu0 %v320
  %v322 = vpop.xlane.xlu0 %321
  %v323 = vsel %vm122, %v115, 0.0
  %v324 = vadd.f32 %v114, %v323
  %325 = vadd.xlane.f32.xlu0 %v324
  %v326 = vpop.xlane.xlu0 %325
  %v327 = vsel %vm122, %v117, 0.0
  %v328 = vadd.f32 %v116, %v327
  %329 = vadd.xlane.f32.xlu0 %v328
  %v330 = vpop.xlane.xlu0 %329
  %v331 = vsel %vm122, %v119, 0.0
  %v332 = vadd.f32 %v118, %v331
  %333 = vadd.xlane.f32.xlu0 %v332
  %v334 = vpop.xlane.xlu0 %333
  %v335 = vsel %vm122, %v121, 0.0
  %v336 = vadd.f32 %v120, %v335
  %337 = vadd.xlane.f32.xlu0 %v336
  %v338 = vpop.xlane.xlu0 %337
  %v339 = vmul.f32 %v126, 0.0051020407
  %v340 = vmul.f32 %v130, 0.0051020407
  %v341 = vmul.f32 %v134, 0.0051020407
  %v342 = vmul.f32 %v138, 0.0051020407
  %v343 = vmul.f32 %v142, 0.0051020407
  %v344 = vmul.f32 %v146, 0.0051020407
  %v345 = vmul.f32 %v150, 0.0051020407
  %v346 = vmul.f32 %v154, 0.0051020407
  %v347 = vmul.f32 %v158, 0.0051020407
  %v348 = vmul.f32 %v162, 0.0051020407
  %v349 = vmul.f32 %v166, 0.0051020407
  %v350 = vmul.f32 %v170, 0.0051020407
  %v351 = vmul.f32 %v174, 0.0051020407
  %v352 = vmul.f32 %v178, 0.0051020407
  %v353 = vmul.f32 %v182, 0.0051020407
  %v354 = vmul.f32 %v186, 0.0051020407
  %v355 = vmul.f32 %v190, 0.0051020407
  %v356 = vmul.f32 %v194, 0.0051020407
  %v357 = vmul.f32 %v198, 0.0051020407
  %v358 = vmul.f32 %v202, 0.0051020407
  %v359 = vmul.f32 %v206, 0.0051020407
  %v360 = vmul.f32 %v210, 0.0051020407
  %v361 = vmul.f32 %v214, 0.0051020407
  %v362 = vmul.f32 %v218, 0.0051020407
  %v363 = vmul.f32 %v222, 0.0051020407
  %v364 = vmul.f32 %v226, 0.0051020407
  %v365 = vmul.f32 %v230, 0.0051020407
  %v366 = vmul.f32 %v234, 0.0051020407
  %v367 = vmul.f32 %v238, 0.0051020407
  %v368 = vmul.f32 %v242, 0.0051020407
  %v369 = vmul.f32 %v246, 0.0051020407
  %v370 = vmul.f32 %v250, 0.0051020407
  %v371 = vmul.f32 %v254, 0.0051020407
  %v372 = vmul.f32 %v258, 0.0051020407
  %v373 = vmul.f32 %v262, 0.0051020407
  %v374 = vmul.f32 %v266, 0.0051020407
  %v375 = vmul.f32 %v270, 0.0051020407
  %v376 = vmul.f32 %v274, 0.0051020407
  %v377 = vmul.f32 %v278, 0.0051020407
  %v378 = vmul.f32 %v282, 0.0051020407
  %v379 = vmul.f32 %v286, 0.0051020407
  %v380 = vmul.f32 %v290, 0.0051020407
  %v381 = vmul.f32 %v294, 0.0051020407
  %v382 = vmul.f32 %v298, 0.0051020407
  %v383 = vmul.f32 %v302, 0.0051020407
  %v384 = vmul.f32 %v306, 0.0051020407
  %v385 = vmul.f32 %v310, 0.0051020407
  %v386 = vmul.f32 %v314, 0.0051020407
  %v387 = vmul.f32 %v318, 0.0051020407
  %v388 = vmul.f32 %v322, 0.0051020407
  %v389 = vmul.f32 %v326, 0.0051020407
  %v390 = vmul.f32 %v330, 0.0051020407
  %v391 = vmul.f32 %v334, 0.0051020407
  %v392 = vmul.f32 %v338, 0.0051020407
  %v393 = vsub.f32 %v14, %v339
  %v394 = vsub.f32 %v15, %v339
  %v395 = vsub.f32 %v16, %v340
  %v396 = vsub.f32 %v17, %v340
  %v397 = vsub.f32 %v18, %v341
  %v398 = vsub.f32 %v19, %v341
  %v399 = vsub.f32 %v20, %v342
  %v400 = vsub.f32 %v21, %v342
  %v401 = vsub.f32 %v22, %v343
  %v402 = vsub.f32 %v23, %v343
  %v403 = vsub.f32 %v24, %v344
  %v404 = vsub.f32 %v25, %v344
  %v405 = vsub.f32 %v26, %v345
  %v406 = vsub.f32 %v27, %v345
  %v407 = vsub.f32 %v28, %v346
  %v408 = vsub.f32 %v29, %v346
  %v409 = vsub.f32 %v30, %v347
  %v410 = vsub.f32 %v31, %v347
  %v411 = vsub.f32 %v32, %v348
  %v412 = vsub.f32 %v33, %v348
  %v413 = vsub.f32 %v34, %v349
  %v414 = vsub.f32 %v35, %v349
  %v415 = vsub.f32 %v36, %v350
  %v416 = vsub.f32 %v37, %v350
  %v417 = vsub.f32 %v38, %v351
  %v418 = vsub.f32 %v39, %v351
  %v419 = vsub.f32 %v40, %v352
  %v420 = vsub.f32 %v41, %v352
  %v421 = vsub.f32 %v42, %v353
  %v422 = vsub.f32 %v43, %v353
  %v423 = vsub.f32 %v44, %v354
  %v424 = vsub.f32 %v45, %v354
  %v425 = vsub.f32 %v46, %v355
  %v426 = vsub.f32 %v47, %v355
  %v427 = vsub.f32 %v48, %v356
  %v428 = vsub.f32 %v49, %v356
  %v429 = vsub.f32 %v50, %v357
  %v430 = vsub.f32 %v51, %v357
  %v431 = vsub.f32 %v52, %v358
  %v432 = vsub.f32 %v53, %v358
  %v433 = vsub.f32 %v54, %v359
  %v434 = vsub.f32 %v55, %v359
  %v435 = vsub.f32 %v56, %v360
  %v436 = vsub.f32 %v57, %v360
  %v437 = vsub.f32 %v58, %v361
  %v438 = vsub.f32 %v59, %v361
  %v439 = vsub.f32 %v60, %v362
  %v440 = vsub.f32 %v61, %v362
  %v441 = vsub.f32 %v62, %v363
  %v442 = vsub.f32 %v63, %v363
  %v443 = vsub.f32 %v64, %v364
  %v444 = vsub.f32 %v65, %v364
  %v445 = vsub.f32 %v66, %v365
  %v446 = vsub.f32 %v67, %v365
  %v447 = vsub.f32 %v68, %v366
  %v448 = vsub.f32 %v69, %v366
  %v449 = vsub.f32 %v70, %v367
  %v450 = vsub.f32 %v71, %v367
  %v451 = vsub.f32 %v72, %v368
  %v452 = vsub.f32 %v73, %v368
  %v453 = vsub.f32 %v74, %v369
  %v454 = vsub.f32 %v75, %v369
  %v455 = vsub.f32 %v76, %v370
  %v456 = vsub.f32 %v77, %v370
  %v457 = vsub.f32 %v78, %v371
  %v458 = vsub.f32 %v79, %v371
  %v459 = vsub.f32 %v80, %v372
  %v460 = vsub.f32 %v81, %v372
  %v461 = vsub.f32 %v82, %v373
  %v462 = vsub.f32 %v83, %v373
  %v463 = vsub.f32 %v84, %v374
  %v464 = vsub.f32 %v85, %v374
  %v465 = vsub.f32 %v86, %v375
  %v466 = vsub.f32 %v87, %v375
  %v467 = vsub.f32 %v88, %v376
  %v468 = vsub.f32 %v89, %v376
  %v469 = vsub.f32 %v90, %v377
  %v470 = vsub.f32 %v91, %v377
  %v471 = vsub.f32 %v92, %v378
  %v472 = vsub.f32 %v93, %v378
  %v473 = vsub.f32 %v94, %v379
  %v474 = vsub.f32 %v95, %v379
  %v475 = vsub.f32 %v96, %v380
  %v476 = vsub.f32 %v97, %v380
  %v477 = vsub.f32 %v98, %v381
  %v478 = vsub.f32 %v99, %v381
  %v479 = vsub.f32 %v100, %v382
  %v480 = vsub.f32 %v101, %v382
  %v481 = vsub.f32 %v102, %v383
  %v482 = vsub.f32 %v103, %v383
  %v483 = vsub.f32 %v104, %v384
  %v484 = vsub.f32 %v105, %v384
  %v485 = vsub.f32 %v106, %v385
  %v486 = vsub.f32 %v107, %v385
  %v487 = vsub.f32 %v108, %v386
  %v488 = vsub.f32 %v109, %v386
  %v489 = vsub.f32 %v110, %v387
  %v490 = vsub.f32 %v111, %v387
  %v491 = vsub.f32 %v112, %v388
  %v492 = vsub.f32 %v113, %v388
  %v493 = vsub.f32 %v114, %v389
  %v494 = vsub.f32 %v115, %v389
  %v495 = vsub.f32 %v116, %v390
  %v496 = vsub.f32 %v117, %v390
  %v497 = vsub.f32 %v118, %v391
  %v498 = vsub.f32 %v119, %v391
  %v499 = vsub.f32 %v120, %v392
  %v500 = vsub.f32 %v121, %v392
  %v501 = vmul.f32 %v393, %v393
  %v502 = vmul.f32 %v394, %v394
  %v503 = vmul.f32 %v395, %v395
  %v504 = vmul.f32 %v396, %v396
  %v505 = vmul.f32 %v397, %v397
  %v506 = vmul.f32 %v398, %v398
  %v507 = vmul.f32 %v399, %v399
  %v508 = vmul.f32 %v400, %v400
  %v509 = vmul.f32 %v401, %v401
  %v510 = vmul.f32 %v402, %v402
  %v511 = vmul.f32 %v403, %v403
  %v512 = vmul.f32 %v404, %v404
  %v513 = vmul.f32 %v405, %v405
  %v514 = vmul.f32 %v406, %v406
  %v515 = vmul.f32 %v407, %v407
  %v516 = vmul.f32 %v408, %v408
  %v517 = vmul.f32 %v409, %v409
  %v518 = vmul.f32 %v410, %v410
  %v519 = vmul.f32 %v411, %v411
  %v520 = vmul.f32 %v412, %v412
  %v521 = vmul.f32 %v413, %v413
  %v522 = vmul.f32 %v414, %v414
  %v523 = vmul.f32 %v415, %v415
  %v524 = vmul.f32 %v416, %v416
  %v525 = vmul.f32 %v417, %v417
  %v526 = vmul.f32 %v418, %v418
  %v527 = vmul.f32 %v419, %v419
  %v528 = vmul.f32 %v420, %v420
  %v529 = vmul.f32 %v421, %v421
  %v530 = vmul.f32 %v422, %v422
  %v531 = vmul.f32 %v423, %v423
  %v532 = vmul.f32 %v424, %v424
  %v533 = vmul.f32 %v425, %v425
  %v534 = vmul.f32 %v426, %v426
  %v535 = vmul.f32 %v427, %v427
  %v536 = vmul.f32 %v428, %v428
  %v537 = vmul.f32 %v429, %v429
  %v538 = vmul.f32 %v430, %v430
  %v539 = vmul.f32 %v431, %v431
  %v540 = vmul.f32 %v432, %v432
  %v541 = vmul.f32 %v433, %v433
  %v542 = vmul.f32 %v434, %v434
  %v543 = vmul.f32 %v435, %v435
  %v544 = vmul.f32 %v436, %v436
  %v545 = vmul.f32 %v437, %v437
  %v546 = vmul.f32 %v438, %v438
  %v547 = vmul.f32 %v439, %v439
  %v548 = vmul.f32 %v440, %v440
  %v549 = vmul.f32 %v441, %v441
  %v550 = vmul.f32 %v442, %v442
  %v551 = vmul.f32 %v443, %v443
  %v552 = vmul.f32 %v444, %v444
  %v553 = vmul.f32 %v445, %v445
  %v554 = vmul.f32 %v446, %v446
  %v555 = vmul.f32 %v447, %v447
  %v556 = vmul.f32 %v448, %v448
  %v557 = vmul.f32 %v449, %v449
  %v558 = vmul.f32 %v450, %v450
  %v559 = vmul.f32 %v451, %v451
  %v560 = vmul.f32 %v452, %v452
  %v561 = vmul.f32 %v453, %v453
  %v562 = vmul.f32 %v454, %v454
  %v563 = vmul.f32 %v455, %v455
  %v564 = vmul.f32 %v456, %v456
  %v565 = vmul.f32 %v457, %v457
  %v566 = vmul.f32 %v458, %v458
  %v567 = vmul.f32 %v459, %v459
  %v568 = vmul.f32 %v460, %v460
  %v569 = vmul.f32 %v461, %v461
  %v570 = vmul.f32 %v462, %v462
  %v571 = vmul.f32 %v463, %v463
  %v572 = vmul.f32 %v464, %v464
  %v573 = vmul.f32 %v465, %v465
  %v574 = vmul.f32 %v466, %v466
  %v575 = vmul.f32 %v467, %v467
  %v576 = vmul.f32 %v468, %v468
  %v577 = vmul.f32 %v469, %v469
  %v578 = vmul.f32 %v470, %v470
  %v579 = vmul.f32 %v471, %v471
  %v580 = vmul.f32 %v472, %v472
  %v581 = vmul.f32 %v473, %v473
  %v582 = vmul.f32 %v474, %v474
  %v583 = vmul.f32 %v475, %v475
  %v584 = vmul.f32 %v476, %v476
  %v585 = vmul.f32 %v477, %v477
  %v586 = vmul.f32 %v478, %v478
  %v587 = vmul.f32 %v479, %v479
  %v588 = vmul.f32 %v480, %v480
  %v589 = vmul.f32 %v481, %v481
  %v590 = vmul.f32 %v482, %v482
  %v591 = vmul.f32 %v483, %v483
  %v592 = vmul.f32 %v484, %v484
  %v593 = vmul.f32 %v485, %v485
  %v594 = vmul.f32 %v486, %v486
  %v595 = vmul.f32 %v487, %v487
  %v596 = vmul.f32 %v488, %v488
  %v597 = vmul.f32 %v489, %v489
  %v598 = vmul.f32 %v490, %v490
  %v599 = vmul.f32 %v491, %v491
  %v600 = vmul.f32 %v492, %v492
  %v601 = vmul.f32 %v493, %v493
  %v602 = vmul.f32 %v494, %v494
  %v603 = vmul.f32 %v495, %v495
  %v604 = vmul.f32 %v496, %v496
  %v605 = vmul.f32 %v497, %v497
  %v606 = vmul.f32 %v498, %v498
  %v607 = vmul.f32 %v499, %v499
  %v608 = vmul.f32 %v500, %v500
  %v609 = vsel %vm122, %v502, 0.0
  %v610 = vadd.f32 %v501, %v609
  %611 = vadd.xlane.f32.xlu0 %v610
  %v612 = vpop.xlane.xlu0 %611
  %v613 = vsel %vm122, %v504, 0.0
  %v614 = vadd.f32 %v503, %v613
  %615 = vadd.xlane.f32.xlu0 %v614
  %v616 = vpop.xlane.xlu0 %615
  %v617 = vsel %vm122, %v506, 0.0
  %v618 = vadd.f32 %v505, %v617
  %619 = vadd.xlane.f32.xlu0 %v618
  %v620 = vpop.xlane.xlu0 %619
  %v621 = vsel %vm122, %v508, 0.0
  %v622 = vadd.f32 %v507, %v621
  %623 = vadd.xlane.f32.xlu0 %v622
  %v624 = vpop.xlane.xlu0 %623
  %v625 = vsel %vm122, %v510, 0.0
  %v626 = vadd.f32 %v509, %v625
  %627 = vadd.xlane.f32.xlu0 %v626
  %v628 = vpop.xlane.xlu0 %627
  %v629 = vsel %vm122, %v512, 0.0
  %v630 = vadd.f32 %v511, %v629
  %631 = vadd.xlane.f32.xlu0 %v630
  %v632 = vpop.xlane.xlu0 %631
  %v633 = vsel %vm122, %v514, 0.0
  %v634 = vadd.f32 %v513, %v633
  %635 = vadd.xlane.f32.xlu0 %v634
  %v636 = vpop.xlane.xlu0 %635
  %v637 = vsel %vm122, %v516, 0.0
  %v638 = vadd.f32 %v515, %v637
  %639 = vadd.xlane.f32.xlu0 %v638
  %v640 = vpop.xlane.xlu0 %639
  %v641 = vsel %vm122, %v518, 0.0
  %v642 = vadd.f32 %v517, %v641
  %643 = vadd.xlane.f32.xlu0 %v642
  %v644 = vpop.xlane.xlu0 %643
  %v645 = vsel %vm122, %v520, 0.0
  %v646 = vadd.f32 %v519, %v645
  %647 = vadd.xlane.f32.xlu0 %v646
  %v648 = vpop.xlane.xlu0 %647
  %v649 = vsel %vm122, %v522, 0.0
  %v650 = vadd.f32 %v521, %v649
  %651 = vadd.xlane.f32.xlu0 %v650
  %v652 = vpop.xlane.xlu0 %651
  %v653 = vsel %vm122, %v524, 0.0
  %v654 = vadd.f32 %v523, %v653
  %655 = vadd.xlane.f32.xlu0 %v654
  %v656 = vpop.xlane.xlu0 %655
  %v657 = vsel %vm122, %v526, 0.0
  %v658 = vadd.f32 %v525, %v657
  %659 = vadd.xlane.f32.xlu0 %v658
  %v660 = vpop.xlane.xlu0 %659
  %v661 = vsel %vm122, %v528, 0.0
  %v662 = vadd.f32 %v527, %v661
  %663 = vadd.xlane.f32.xlu0 %v662
  %v664 = vpop.xlane.xlu0 %663
  %v665 = vsel %vm122, %v530, 0.0
  %v666 = vadd.f32 %v529, %v665
  %667 = vadd.xlane.f32.xlu0 %v666
  %v668 = vpop.xlane.xlu0 %667
  %v669 = vsel %vm122, %v532, 0.0
  %v670 = vadd.f32 %v531, %v669
  %671 = vadd.xlane.f32.xlu0 %v670
  %v672 = vpop.xlane.xlu0 %671
  %v673 = vsel %vm122, %v534, 0.0
  %v674 = vadd.f32 %v533, %v673
  %675 = vadd.xlane.f32.xlu0 %v674
  %v676 = vpop.xlane.xlu0 %675
  %v677 = vsel %vm122, %v536, 0.0
  %v678 = vadd.f32 %v535, %v677
  %679 = vadd.xlane.f32.xlu0 %v678
  %v680 = vpop.xlane.xlu0 %679
  %v681 = vsel %vm122, %v538, 0.0
  %v682 = vadd.f32 %v537, %v681
  %683 = vadd.xlane.f32.xlu0 %v682
  %v684 = vpop.xlane.xlu0 %683
  %v685 = vsel %vm122, %v540, 0.0
  %v686 = vadd.f32 %v539, %v685
  %687 = vadd.xlane.f32.xlu0 %v686
  %v688 = vpop.xlane.xlu0 %687
  %v689 = vsel %vm122, %v542, 0.0
  %v690 = vadd.f32 %v541, %v689
  %691 = vadd.xlane.f32.xlu0 %v690
  %v692 = vpop.xlane.xlu0 %691
  %v693 = vsel %vm122, %v544, 0.0
  %v694 = vadd.f32 %v543, %v693
  %695 = vadd.xlane.f32.xlu0 %v694
  %v696 = vpop.xlane.xlu0 %695
  %v697 = vsel %vm122, %v546, 0.0
  %v698 = vadd.f32 %v545, %v697
  %699 = vadd.xlane.f32.xlu0 %v698
  %v700 = vpop.xlane.xlu0 %699
  %v701 = vsel %vm122, %v548, 0.0
  %v702 = vadd.f32 %v547, %v701
  %703 = vadd.xlane.f32.xlu0 %v702
  %v704 = vpop.xlane.xlu0 %703
  %v705 = vsel %vm122, %v550, 0.0
  %v706 = vadd.f32 %v549, %v705
  %707 = vadd.xlane.f32.xlu0 %v706
  %v708 = vpop.xlane.xlu0 %707
  %v709 = vsel %vm122, %v552, 0.0
  %v710 = vadd.f32 %v551, %v709
  %711 = vadd.xlane.f32.xlu0 %v710
  %v712 = vpop.xlane.xlu0 %711
  %v713 = vsel %vm122, %v554, 0.0
  %v714 = vadd.f32 %v553, %v713
  %715 = vadd.xlane.f32.xlu0 %v714
  %v716 = vpop.xlane.xlu0 %715
  %v717 = vsel %vm122, %v556, 0.0
  %v718 = vadd.f32 %v555, %v717
  %719 = vadd.xlane.f32.xlu0 %v718
  %v720 = vpop.xlane.xlu0 %719
  %v721 = vsel %vm122, %v558, 0.0
  %v722 = vadd.f32 %v557, %v721
  %723 = vadd.xlane.f32.xlu0 %v722
  %v724 = vpop.xlane.xlu0 %723
  %v725 = vsel %vm122, %v560, 0.0
  %v726 = vadd.f32 %v559, %v725
  %727 = vadd.xlane.f32.xlu0 %v726
  %v728 = vpop.xlane.xlu0 %727
  %v729 = vsel %vm122, %v562, 0.0
  %v730 = vadd.f32 %v561, %v729
  %731 = vadd.xlane.f32.xlu0 %v730
  %v732 = vpop.xlane.xlu0 %731
  %v733 = vsel %vm122, %v564, 0.0
  %v734 = vadd.f32 %v563, %v733
  %735 = vadd.xlane.f32.xlu0 %v734
  %v736 = vpop.xlane.xlu0 %735
  %v737 = vsel %vm122, %v566, 0.0
  %v738 = vadd.f32 %v565, %v737
  %739 = vadd.xlane.f32.xlu0 %v738
  %v740 = vpop.xlane.xlu0 %739
  %v741 = vsel %vm122, %v568, 0.0
  %v742 = vadd.f32 %v567, %v741
  %743 = vadd.xlane.f32.xlu0 %v742
  %v744 = vpop.xlane.xlu0 %743
  %v745 = vsel %vm122, %v570, 0.0
  %v746 = vadd.f32 %v569, %v745
  %747 = vadd.xlane.f32.xlu0 %v746
  %v748 = vpop.xlane.xlu0 %747
  %v749 = vsel %vm122, %v572, 0.0
  %v750 = vadd.f32 %v571, %v749
  %751 = vadd.xlane.f32.xlu0 %v750
  %v752 = vpop.xlane.xlu0 %751
  %v753 = vsel %vm122, %v574, 0.0
  %v754 = vadd.f32 %v573, %v753
  %755 = vadd.xlane.f32.xlu0 %v754
  %v756 = vpop.xlane.xlu0 %755
  %v757 = vsel %vm122, %v576, 0.0
  %v758 = vadd.f32 %v575, %v757
  %759 = vadd.xlane.f32.xlu0 %v758
  %v760 = vpop.xlane.xlu0 %759
  %v761 = vsel %vm122, %v578, 0.0
  %v762 = vadd.f32 %v577, %v761
  %763 = vadd.xlane.f32.xlu0 %v762
  %v764 = vpop.xlane.xlu0 %763
  %v765 = vsel %vm122, %v580, 0.0
  %v766 = vadd.f32 %v579, %v765
  %767 = vadd.xlane.f32.xlu0 %v766
  %v768 = vpop.xlane.xlu0 %767
  %v769 = vsel %vm122, %v582, 0.0
  %v770 = vadd.f32 %v581, %v769
  %771 = vadd.xlane.f32.xlu0 %v770
  %v772 = vpop.xlane.xlu0 %771
  %v773 = vsel %vm122, %v584, 0.0
  %v774 = vadd.f32 %v583, %v773
  %775 = vadd.xlane.f32.xlu0 %v774
  %v776 = vpop.xlane.xlu0 %775
  %v777 = vsel %vm122, %v586, 0.0
  %v778 = vadd.f32 %v585, %v777
  %779 = vadd.xlane.f32.xlu0 %v778
  %v780 = vpop.xlane.xlu0 %779
  %v781 = vsel %vm122, %v588, 0.0
  %v782 = vadd.f32 %v587, %v781
  %783 = vadd.xlane.f32.xlu0 %v782
  %v784 = vpop.xlane.xlu0 %783
  %v785 = vsel %vm122, %v590, 0.0
  %v786 = vadd.f32 %v589, %v785
  %787 = vadd.xlane.f32.xlu0 %v786
  %v788 = vpop.xlane.xlu0 %787
  %v789 = vsel %vm122, %v592, 0.0
  %v790 = vadd.f32 %v591, %v789
  %791 = vadd.xlane.f32.xlu0 %v790
  %v792 = vpop.xlane.xlu0 %791
  %v793 = vsel %vm122, %v594, 0.0
  %v794 = vadd.f32 %v593, %v793
  %795 = vadd.xlane.f32.xlu0 %v794
  %v796 = vpop.xlane.xlu0 %795
  %v797 = vsel %vm122, %v596, 0.0
  %v798 = vadd.f32 %v595, %v797
  %799 = vadd.xlane.f32.xlu0 %v798
  %v800 = vpop.xlane.xlu0 %799
  %v801 = vsel %vm122, %v598, 0.0
  %v802 = vadd.f32 %v597, %v801
  %803 = vadd.xlane.f32.xlu0 %v802
  %v804 = vpop.xlane.xlu0 %803
  %v805 = vsel %vm122, %v600, 0.0
  %v806 = vadd.f32 %v599, %v805
  %807 = vadd.xlane.f32.xlu0 %v806
  %v808 = vpop.xlane.xlu0 %807
  %v809 = vsel %vm122, %v602, 0.0
  %v810 = vadd.f32 %v601, %v809
  %811 = vadd.xlane.f32.xlu0 %v810
  %v812 = vpop.xlane.xlu0 %811
  %v813 = vsel %vm122, %v604, 0.0
  %v814 = vadd.f32 %v603, %v813
  %815 = vadd.xlane.f32.xlu0 %v814
  %v816 = vpop.xlane.xlu0 %815
  %v817 = vsel %vm122, %v606, 0.0
  %v818 = vadd.f32 %v605, %v817
  %819 = vadd.xlane.f32.xlu0 %v818
  %v820 = vpop.xlane.xlu0 %819
  %v821 = vsel %vm122, %v608, 0.0
  %v822 = vadd.f32 %v607, %v821
  %823 = vadd.xlane.f32.xlu0 %v822
  %v824 = vpop.xlane.xlu0 %823
  %v825 = vmul.f32 %v612, 0.0051020407
  %v826 = vmul.f32 %v616, 0.0051020407
  %v827 = vmul.f32 %v620, 0.0051020407
  %v828 = vmul.f32 %v624, 0.0051020407
  %v829 = vmul.f32 %v628, 0.0051020407
  %v830 = vmul.f32 %v632, 0.0051020407
  %v831 = vmul.f32 %v636, 0.0051020407
  %v832 = vmul.f32 %v640, 0.0051020407
  %v833 = vmul.f32 %v644, 0.0051020407
  %v834 = vmul.f32 %v648, 0.0051020407
  %v835 = vmul.f32 %v652, 0.0051020407
  %v836 = vmul.f32 %v656, 0.0051020407
  %v837 = vmul.f32 %v660, 0.0051020407
  %v838 = vmul.f32 %v664, 0.0051020407
  %v839 = vmul.f32 %v668, 0.0051020407
  %v840 = vmul.f32 %v672, 0.0051020407
  %v841 = vmul.f32 %v676, 0.0051020407
  %v842 = vmul.f32 %v680, 0.0051020407
  %v843 = vmul.f32 %v684, 0.0051020407
  %v844 = vmul.f32 %v688, 0.0051020407
  %v845 = vmul.f32 %v692, 0.0051020407
  %v846 = vmul.f32 %v696, 0.0051020407
  %v847 = vmul.f32 %v700, 0.0051020407
  %v848 = vmul.f32 %v704, 0.0051020407
  %v849 = vmul.f32 %v708, 0.0051020407
  %v850 = vmul.f32 %v712, 0.0051020407
  %v851 = vmul.f32 %v716, 0.0051020407
  %v852 = vmul.f32 %v720, 0.0051020407
  %v853 = vmul.f32 %v724, 0.0051020407
  %v854 = vmul.f32 %v728, 0.0051020407
  %v855 = vmul.f32 %v732, 0.0051020407
  %v856 = vmul.f32 %v736, 0.0051020407
  %v857 = vmul.f32 %v740, 0.0051020407
  %v858 = vmul.f32 %v744, 0.0051020407
  %v859 = vmul.f32 %v748, 0.0051020407
  %v860 = vmul.f32 %v752, 0.0051020407
  %v861 = vmul.f32 %v756, 0.0051020407
  %v862 = vmul.f32 %v760, 0.0051020407
  %v863 = vmul.f32 %v764, 0.0051020407
  %v864 = vmul.f32 %v768, 0.0051020407
  %v865 = vmul.f32 %v772, 0.0051020407
  %v866 = vmul.f32 %v776, 0.0051020407
  %v867 = vmul.f32 %v780, 0.0051020407
  %v868 = vmul.f32 %v784, 0.0051020407
  %v869 = vmul.f32 %v788, 0.0051020407
  %v870 = vmul.f32 %v792, 0.0051020407
  %v871 = vmul.f32 %v796, 0.0051020407
  %v872 = vmul.f32 %v800, 0.0051020407
  %v873 = vmul.f32 %v804, 0.0051020407
  %v874 = vmul.f32 %v808, 0.0051020407
  %v875 = vmul.f32 %v812, 0.0051020407
  %v876 = vmul.f32 %v816, 0.0051020407
  %v877 = vmul.f32 %v820, 0.0051020407
  %v878 = vmul.f32 %v824, 0.0051020407
  %v879 = vadd.f32 %v825, 1e-05
  %v880 = vadd.f32 %v826, 1e-05
  %v881 = vadd.f32 %v827, 1e-05
  %v882 = vadd.f32 %v828, 1e-05
  %v883 = vadd.f32 %v829, 1e-05
  %v884 = vadd.f32 %v830, 1e-05
  %v885 = vadd.f32 %v831, 1e-05
  %v886 = vadd.f32 %v832, 1e-05
  %v887 = vadd.f32 %v833, 1e-05
  %v888 = vadd.f32 %v834, 1e-05
  %v889 = vadd.f32 %v835, 1e-05
  %v890 = vadd.f32 %v836, 1e-05
  %v891 = vadd.f32 %v837, 1e-05
  %v892 = vadd.f32 %v838, 1e-05
  %v893 = vadd.f32 %v839, 1e-05
  %v894 = vadd.f32 %v840, 1e-05
  %v895 = vadd.f32 %v841, 1e-05
  %v896 = vadd.f32 %v842, 1e-05
  %v897 = vadd.f32 %v843, 1e-05
  %v898 = vadd.f32 %v844, 1e-05
  %v899 = vadd.f32 %v845, 1e-05
  %v900 = vadd.f32 %v846, 1e-05
  %v901 = vadd.f32 %v847, 1e-05
  %v902 = vadd.f32 %v848, 1e-05
  %v903 = vadd.f32 %v849, 1e-05
  %v904 = vadd.f32 %v850, 1e-05
  %v905 = vadd.f32 %v851, 1e-05
  %v906 = vadd.f32 %v852, 1e-05
  %v907 = vadd.f32 %v853, 1e-05
  %v908 = vadd.f32 %v854, 1e-05
  %v909 = vadd.f32 %v855, 1e-05
  %v910 = vadd.f32 %v856, 1e-05
  %v911 = vadd.f32 %v857, 1e-05
  %v912 = vadd.f32 %v858, 1e-05
  %v913 = vadd.f32 %v859, 1e-05
  %v914 = vadd.f32 %v860, 1e-05
  %v915 = vadd.f32 %v861, 1e-05
  %v916 = vadd.f32 %v862, 1e-05
  %v917 = vadd.f32 %v863, 1e-05
  %v918 = vadd.f32 %v864, 1e-05
  %v919 = vadd.f32 %v865, 1e-05
  %v920 = vadd.f32 %v866, 1e-05
  %v921 = vadd.f32 %v867, 1e-05
  %v922 = vadd.f32 %v868, 1e-05
  %v923 = vadd.f32 %v869, 1e-05
  %v924 = vadd.f32 %v870, 1e-05
  %v925 = vadd.f32 %v871, 1e-05
  %v926 = vadd.f32 %v872, 1e-05
  %v927 = vadd.f32 %v873, 1e-05
  %v928 = vadd.f32 %v874, 1e-05
  %v929 = vadd.f32 %v875, 1e-05
  %v930 = vadd.f32 %v876, 1e-05
  %v931 = vadd.f32 %v877, 1e-05
  %v932 = vadd.f32 %v878, 1e-05
  %v933 = vrsqrt.pop %v879
  %v934 = vrsqrt.pop %v880
  %v935 = vrsqrt.pop %v881
  %v936 = vrsqrt.pop %v882
  %v937 = vrsqrt.pop %v883
  %v938 = vrsqrt.pop %v884
  %v939 = vrsqrt.pop %v885
  %v940 = vrsqrt.pop %v886
  %v941 = vrsqrt.pop %v887
  %v942 = vrsqrt.pop %v888
  %v943 = vrsqrt.pop %v889
  %v944 = vrsqrt.pop %v890
  %v945 = vrsqrt.pop %v891
  %v946 = vrsqrt.pop %v892
  %v947 = vrsqrt.pop %v893
  %v948 = vrsqrt.pop %v894
  %v949 = vrsqrt.pop %v895
  %v950 = vrsqrt.pop %v896
  %v951 = vrsqrt.pop %v897
  %v952 = vrsqrt.pop %v898
  %v953 = vrsqrt.pop %v899
  %v954 = vrsqrt.pop %v900
  %v955 = vrsqrt.pop %v901
  %v956 = vrsqrt.pop %v902
  %v957 = vrsqrt.pop %v903
  %v958 = vrsqrt.pop %v904
  %v959 = vrsqrt.pop %v905
  %v960 = vrsqrt.pop %v906
  %v961 = vrsqrt.pop %v907
  %v962 = vrsqrt.pop %v908
  %v963 = vrsqrt.pop %v909
  %v964 = vrsqrt.pop %v910
  %v965 = vrsqrt.pop %v911
  %v966 = vrsqrt.pop %v912
  %v967 = vrsqrt.pop %v913
  %v968 = vrsqrt.pop %v914
  %v969 = vrsqrt.pop %v915
  %v970 = vrsqrt.pop %v916
  %v971 = vrsqrt.pop %v917
  %v972 = vrsqrt.pop %v918
  %v973 = vrsqrt.pop %v919
  %v974 = vrsqrt.pop %v920
  %v975 = vrsqrt.pop %v921
  %v976 = vrsqrt.pop %v922
  %v977 = vrsqrt.pop %v923
  %v978 = vrsqrt.pop %v924
  %v979 = vrsqrt.pop %v925
  %v980 = vrsqrt.pop %v926
  %v981 = vrsqrt.pop %v927
  %v982 = vrsqrt.pop %v928
  %v983 = vrsqrt.pop %v929
  %v984 = vrsqrt.pop %v930
  %v985 = vrsqrt.pop %v931
  %v986 = vrsqrt.pop %v932
  %v987 = vld [vmem:[%s2] sm:$0xff]
  %v988 = vld [vmem:[%s2 + $0x8] sm:$0xff]
  %v989 = vld [vmem:[%s2 + $0x10] sm:$0xff]
  %v990 = vld [vmem:[%s2 + $0x18] sm:$0xff]
  %v991 = vld [vmem:[%s2 + $0x20] sm:$0xff]
  %v992 = vld [vmem:[%s2 + $0x28] sm:$0xff]
  %v993 = vld [vmem:[%s2 + $0x30] sm:$0xff]
  %v994 = vld [vmem:[%s2 + $0x38] sm:$0xff]
  %v995 = vld [vmem:[%s2 + $0x40] sm:$0xff]
  %v996 = vld [vmem:[%s2 + $0x48] sm:$0xff]
  %v997 = vld [vmem:[%s2 + $0x50] sm:$0xff]
  %v998 = vld [vmem:[%s2 + $0x58] sm:$0xff]
  %v999 = vld [vmem:[%s2 + $0x60] sm:$0xff]
  %v1000 = vld [vmem:[%s2 + $0x68] sm:$0xff]
  %v1001 = vld [vmem:[%s2 + $0x70] sm:$0xff]
  %v1002 = vld [vmem:[%s2 + $0x78] sm:$0xff]
  %v1003 = vld [vmem:[%s2 + $0x80] sm:$0xff]
  %v1004 = vld [vmem:[%s2 + $0x88] sm:$0xff]
  %v1005 = vld [vmem:[%s2 + $0x90] sm:$0xff]
  %v1006 = vld [vmem:[%s2 + $0x98] sm:$0xff]
  %v1007 = vld [vmem:[%s2 + $0xa0] sm:$0xff]
  %v1008 = vld [vmem:[%s2 + $0xa8] sm:$0xff]
  %v1009 = vld [vmem:[%s2 + $0xb0] sm:$0xff]
  %v1010 = vld [vmem:[%s2 + $0xb8] sm:$0xff]
  %v1011 = vld [vmem:[%s2 + $0xc0] sm:$0xff]
  %v1012 = vld [vmem:[%s2 + $0xc8] sm:$0xff]
  %v1013 = vld [vmem:[%s2 + $0xd0] sm:$0xff]
  %v1014 = vld [vmem:[%s2 + $0xd8] sm:$0xff]
  %v1015 = vld [vmem:[%s2 + $0xe0] sm:$0xff]
  %v1016 = vld [vmem:[%s2 + $0xe8] sm:$0xff]
  %v1017 = vld [vmem:[%s2 + $0xf0] sm:$0xff]
  %v1018 = vld [vmem:[%s2 + $0xf8] sm:$0xff]
  %v1019 = vld [vmem:[%s2 + $0x100] sm:$0xff]
  %v1020 = vld [vmem:[%s2 + $0x108] sm:$0xff]
  %v1021 = vld [vmem:[%s2 + $0x110] sm:$0xff]
  %v1022 = vld [vmem:[%s2 + $0x118] sm:$0xff]
  %v1023 = vld [vmem:[%s2 + $0x120] sm:$0xff]
  %v1024 = vld [vmem:[%s2 + $0x128] sm:$0xff]
  %v1025 = vld [vmem:[%s2 + $0x130] sm:$0xff]
  %v1026 = vld [vmem:[%s2 + $0x138] sm:$0xff]
  %v1027 = vld [vmem:[%s2 + $0x140] sm:$0xff]
  %v1028 = vld [vmem:[%s2 + $0x148] sm:$0xff]
  %v1029 = vld [vmem:[%s2 + $0x150] sm:$0xff]
  %v1030 = vld [vmem:[%s2 + $0x158] sm:$0xff]
  %v1031 = vld [vmem:[%s2 + $0x160] sm:$0xff]
  %v1032 = vld [vmem:[%s2 + $0x168] sm:$0xff]
  %v1033 = vld [vmem:[%s2 + $0x170] sm:$0xff]
  %v1034 = vld [vmem:[%s2 + $0x178] sm:$0xff]
  %v1035 = vld [vmem:[%s2 + $0x180] sm:$0xff]
  %v1036 = vld [vmem:[%s2 + $0x188] sm:$0xff]
  %v1037 = vld [vmem:[%s2 + $0x190] sm:$0xff]
  %v1038 = vld [vmem:[%s2 + $0x198] sm:$0xff]
  %v1039 = vld [vmem:[%s2 + $0x1a0] sm:$0xff]
  %v1040 = vld [vmem:[%s2 + $0x1a8] sm:$0xff]
  %v1041 = vmul.f32 %v987, %v933
  %v1042 = vmul.f32 %v988, %v934
  %v1043 = vmul.f32 %v989, %v935
  %v1044 = vmul.f32 %v990, %v936
  %v1045 = vmul.f32 %v991, %v937
  %v1046 = vmul.f32 %v992, %v938
  %v1047 = vmul.f32 %v993, %v939
  %v1048 = vmul.f32 %v994, %v940
  %v1049 = vmul.f32 %v995, %v941
  %v1050 = vmul.f32 %v996, %v942
  %v1051 = vmul.f32 %v997, %v943
  %v1052 = vmul.f32 %v998, %v944
  %v1053 = vmul.f32 %v999, %v945
  %v1054 = vmul.f32 %v1000, %v946
  %v1055 = vmul.f32 %v1001, %v947
  %v1056 = vmul.f32 %v1002, %v948
  %v1057 = vmul.f32 %v1003, %v949
  %v1058 = vmul.f32 %v1004, %v950
  %v1059 = vmul.f32 %v1005, %v951
  %v1060 = vmul.f32 %v1006, %v952
  %v1061 = vmul.f32 %v1007, %v953
  %v1062 = vmul.f32 %v1008, %v954
  %v1063 = vmul.f32 %v1009, %v955
  %v1064 = vmul.f32 %v1010, %v956
  %v1065 = vmul.f32 %v1011, %v957
  %v1066 = vmul.f32 %v1012, %v958
  %v1067 = vmul.f32 %v1013, %v959
  %v1068 = vmul.f32 %v1014, %v960
  %v1069 = vmul.f32 %v1015, %v961
  %v1070 = vmul.f32 %v1016, %v962
  %v1071 = vmul.f32 %v1017, %v963
  %v1072 = vmul.f32 %v1018, %v964
  %v1073 = vmul.f32 %v1019, %v965
  %v1074 = vmul.f32 %v1020, %v966
  %v1075 = vmul.f32 %v1021, %v967
  %v1076 = vmul.f32 %v1022, %v968
  %v1077 = vmul.f32 %v1023, %v969
  %v1078 = vmul.f32 %v1024, %v970
  %v1079 = vmul.f32 %v1025, %v971
  %v1080 = vmul.f32 %v1026, %v972
  %v1081 = vmul.f32 %v1027, %v973
  %v1082 = vmul.f32 %v1028, %v974
  %v1083 = vmul.f32 %v1029, %v975
  %v1084 = vmul.f32 %v1030, %v976
  %v1085 = vmul.f32 %v1031, %v977
  %v1086 = vmul.f32 %v1032, %v978
  %v1087 = vmul.f32 %v1033, %v979
  %v1088 = vmul.f32 %v1034, %v980
  %v1089 = vmul.f32 %v1035, %v981
  %v1090 = vmul.f32 %v1036, %v982
  %v1091 = vmul.f32 %v1037, %v983
  %v1092 = vmul.f32 %v1038, %v984
  %v1093 = vmul.f32 %v1039, %v985
  %v1094 = vmul.f32 %v1040, %v986
  %v1095 = vld [vmem:[%s1] sm:$0xff]
  %v1096 = vld [vmem:[%s1 + $0x8] sm:$0xff]
  %v1097 = vld [vmem:[%s1 + $0x10] sm:$0xff]
  %v1098 = vld [vmem:[%s1 + $0x18] sm:$0xff]
  %v1099 = vld [vmem:[%s1 + $0x20] sm:$0xff]
  %v1100 = vld [vmem:[%s1 + $0x28] sm:$0xff]
  %v1101 = vld [vmem:[%s1 + $0x30] sm:$0xff]
  %v1102 = vld [vmem:[%s1 + $0x38] sm:$0xff]
  %v1103 = vld [vmem:[%s1 + $0x40] sm:$0xff]
  %v1104 = vld [vmem:[%s1 + $0x48] sm:$0xff]
  %v1105 = vld [vmem:[%s1 + $0x50] sm:$0xff]
  %v1106 = vld [vmem:[%s1 + $0x58] sm:$0xff]
  %v1107 = vld [vmem:[%s1 + $0x60] sm:$0xff]
  %v1108 = vld [vmem:[%s1 + $0x68] sm:$0xff]
  %v1109 = vld [vmem:[%s1 + $0x70] sm:$0xff]
  %v1110 = vld [vmem:[%s1 + $0x78] sm:$0xff]
  %v1111 = vld [vmem:[%s1 + $0x80] sm:$0xff]
  %v1112 = vld [vmem:[%s1 + $0x88] sm:$0xff]
  %v1113 = vld [vmem:[%s1 + $0x90] sm:$0xff]
  %v1114 = vld [vmem:[%s1 + $0x98] sm:$0xff]
  %v1115 = vld [vmem:[%s1 + $0xa0] sm:$0xff]
  %v1116 = vld [vmem:[%s1 + $0xa8] sm:$0xff]
  %v1117 = vld [vmem:[%s1 + $0xb0] sm:$0xff]
  %v1118 = vld [vmem:[%s1 + $0xb8] sm:$0xff]
  %v1119 = vld [vmem:[%s1 + $0xc0] sm:$0xff]
  %v1120 = vld [vmem:[%s1 + $0xc8] sm:$0xff]
  %v1121 = vld [vmem:[%s1 + $0xd0] sm:$0xff]
  %v1122 = vld [vmem:[%s1 + $0xd8] sm:$0xff]
  %v1123 = vld [vmem:[%s1 + $0xe0] sm:$0xff]
  %v1124 = vld [vmem:[%s1 + $0xe8] sm:$0xff]
  %v1125 = vld [vmem:[%s1 + $0xf0] sm:$0xff]
  %v1126 = vld [vmem:[%s1 + $0xf8] sm:$0xff]
  %v1127 = vld [vmem:[%s1 + $0x100] sm:$0xff]
  %v1128 = vld [vmem:[%s1 + $0x108] sm:$0xff]
  %v1129 = vld [vmem:[%s1 + $0x110] sm:$0xff]
  %v1130 = vld [vmem:[%s1 + $0x118] sm:$0xff]
  %v1131 = vld [vmem:[%s1 + $0x120] sm:$0xff]
  %v1132 = vld [vmem:[%s1 + $0x128] sm:$0xff]
  %v1133 = vld [vmem:[%s1 + $0x130] sm:$0xff]
  %v1134 = vld [vmem:[%s1 + $0x138] sm:$0xff]
  %v1135 = vld [vmem:[%s1 + $0x140] sm:$0xff]
  %v1136 = vld [vmem:[%s1 + $0x148] sm:$0xff]
  %v1137 = vld [vmem:[%s1 + $0x150] sm:$0xff]
  %v1138 = vld [vmem:[%s1 + $0x158] sm:$0xff]
  %v1139 = vld [vmem:[%s1 + $0x160] sm:$0xff]
  %v1140 = vld [vmem:[%s1 + $0x168] sm:$0xff]
  %v1141 = vld [vmem:[%s1 + $0x170] sm:$0xff]
  %v1142 = vld [vmem:[%s1 + $0x178] sm:$0xff]
  %v1143 = vld [vmem:[%s1 + $0x180] sm:$0xff]
  %v1144 = vld [vmem:[%s1 + $0x188] sm:$0xff]
  %v1145 = vld [vmem:[%s1 + $0x190] sm:$0xff]
  %v1146 = vld [vmem:[%s1 + $0x198] sm:$0xff]
  %v1147 = vld [vmem:[%s1 + $0x1a0] sm:$0xff]
  %v1148 = vld [vmem:[%s1 + $0x1a8] sm:$0xff]
  %v1149 = vld [vmem:[%s1 + $0x1b0] sm:$0xff]
  %v1150 = vld [vmem:[%s1 + $0x1b8] sm:$0xff]
  %v1151 = vld [vmem:[%s1 + $0x1c0] sm:$0xff]
  %v1152 = vld [vmem:[%s1 + $0x1c8] sm:$0xff]
  %v1153 = vld [vmem:[%s1 + $0x1d0] sm:$0xff]
  %v1154 = vld [vmem:[%s1 + $0x1d8] sm:$0xff]
  %v1155 = vld [vmem:[%s1 + $0x1e0] sm:$0xff]
  %v1156 = vld [vmem:[%s1 + $0x1e8] sm:$0xff]
  %v1157 = vld [vmem:[%s1 + $0x1f0] sm:$0xff]
  %v1158 = vld [vmem:[%s1 + $0x1f8] sm:$0xff]
  %v1159 = vld [vmem:[%s1 + $0x200] sm:$0xff]
  %v1160 = vld [vmem:[%s1 + $0x208] sm:$0xff]
  %v1161 = vld [vmem:[%s1 + $0x210] sm:$0xff]
  %v1162 = vld [vmem:[%s1 + $0x218] sm:$0xff]
  %v1163 = vld [vmem:[%s1 + $0x220] sm:$0xff]
  %v1164 = vld [vmem:[%s1 + $0x228] sm:$0xff]
  %v1165 = vld [vmem:[%s1 + $0x230] sm:$0xff]
  %v1166 = vld [vmem:[%s1 + $0x238] sm:$0xff]
  %v1167 = vld [vmem:[%s1 + $0x240] sm:$0xff]
  %v1168 = vld [vmem:[%s1 + $0x248] sm:$0xff]
  %v1169 = vld [vmem:[%s1 + $0x250] sm:$0xff]
  %v1170 = vld [vmem:[%s1 + $0x258] sm:$0xff]
  %v1171 = vld [vmem:[%s1 + $0x260] sm:$0xff]
  %v1172 = vld [vmem:[%s1 + $0x268] sm:$0xff]
  %v1173 = vld [vmem:[%s1 + $0x270] sm:$0xff]
  %v1174 = vld [vmem:[%s1 + $0x278] sm:$0xff]
  %v1175 = vld [vmem:[%s1 + $0x280] sm:$0xff]
  %v1176 = vld [vmem:[%s1 + $0x288] sm:$0xff]
  %v1177 = vld [vmem:[%s1 + $0x290] sm:$0xff]
  %v1178 = vld [vmem:[%s1 + $0x298] sm:$0xff]
  %v1179 = vld [vmem:[%s1 + $0x2a0] sm:$0xff]
  %v1180 = vld [vmem:[%s1 + $0x2a8] sm:$0xff]
  %v1181 = vld [vmem:[%s1 + $0x2b0] sm:$0xff]
  %v1182 = vld [vmem:[%s1 + $0x2b8] sm:$0xff]
  %v1183 = vld [vmem:[%s1 + $0x2c0] sm:$0xff]
  %v1184 = vld [vmem:[%s1 + $0x2c8] sm:$0xff]
  %v1185 = vld [vmem:[%s1 + $0x2d0] sm:$0xff]
  %v1186 = vld [vmem:[%s1 + $0x2d8] sm:$0xff]
  %v1187 = vld [vmem:[%s1 + $0x2e0] sm:$0xff]
  %v1188 = vld [vmem:[%s1 + $0x2e8] sm:$0xff]
  %v1189 = vld [vmem:[%s1 + $0x2f0] sm:$0xff]
  %v1190 = vld [vmem:[%s1 + $0x2f8] sm:$0xff]
  %v1191 = vld [vmem:[%s1 + $0x300] sm:$0xff]
  %v1192 = vld [vmem:[%s1 + $0x308] sm:$0xff]
  %v1193 = vld [vmem:[%s1 + $0x310] sm:$0xff]
  %v1194 = vld [vmem:[%s1 + $0x318] sm:$0xff]
  %v1195 = vld [vmem:[%s1 + $0x320] sm:$0xff]
  %v1196 = vld [vmem:[%s1 + $0x328] sm:$0xff]
  %v1197 = vld [vmem:[%s1 + $0x330] sm:$0xff]
  %v1198 = vld [vmem:[%s1 + $0x338] sm:$0xff]
  %v1199 = vld [vmem:[%s1 + $0x340] sm:$0xff]
  %v1200 = vld [vmem:[%s1 + $0x348] sm:$0xff]
  %v1201 = vld [vmem:[%s1 + $0x350] sm:$0xff]
  %v1202 = vld [vmem:[%s1 + $0x358] sm:$0xff]
  %1204 = vset.pattern.permute.xlu0 0
  %1205 = vperm.xlu0 %1204, %v1041
  %v1206 = vpop.permute.xlu0 %1205
  %1209 = vset.pattern.permute.xlu0 0
  %1210 = vperm.xlu0 %1209, %v1042
  %v1211 = vpop.permute.xlu0 %1210
  %1214 = vset.pattern.permute.xlu0 0
  %1215 = vperm.xlu0 %1214, %v1043
  %v1216 = vpop.permute.xlu0 %1215
  %1219 = vset.pattern.permute.xlu0 0
  %1220 = vperm.xlu0 %1219, %v1044
  %v1221 = vpop.permute.xlu0 %1220
  %1224 = vset.pattern.permute.xlu0 0
  %1225 = vperm.xlu0 %1224, %v1045
  %v1226 = vpop.permute.xlu0 %1225
  %1229 = vset.pattern.permute.xlu0 0
  %1230 = vperm.xlu0 %1229, %v1046
  %v1231 = vpop.permute.xlu0 %1230
  %1234 = vset.pattern.permute.xlu0 0
  %1235 = vperm.xlu0 %1234, %v1047
  %v1236 = vpop.permute.xlu0 %1235
  %1239 = vset.pattern.permute.xlu0 0
  %1240 = vperm.xlu0 %1239, %v1048
  %v1241 = vpop.permute.xlu0 %1240
  %1244 = vset.pattern.permute.xlu0 0
  %1245 = vperm.xlu0 %1244, %v1049
  %v1246 = vpop.permute.xlu0 %1245
  %1249 = vset.pattern.permute.xlu0 0
  %1250 = vperm.xlu0 %1249, %v1050
  %v1251 = vpop.permute.xlu0 %1250
  %1254 = vset.pattern.permute.xlu0 0
  %1255 = vperm.xlu0 %1254, %v1051
  %v1256 = vpop.permute.xlu0 %1255
  %1259 = vset.pattern.permute.xlu0 0
  %1260 = vperm.xlu0 %1259, %v1052
  %v1261 = vpop.permute.xlu0 %1260
  %1264 = vset.pattern.permute.xlu0 0
  %1265 = vperm.xlu0 %1264, %v1053
  %v1266 = vpop.permute.xlu0 %1265
  %1269 = vset.pattern.permute.xlu0 0
  %1270 = vperm.xlu0 %1269, %v1054
  %v1271 = vpop.permute.xlu0 %1270
  %1274 = vset.pattern.permute.xlu0 0
  %1275 = vperm.xlu0 %1274, %v1055
  %v1276 = vpop.permute.xlu0 %1275
  %1279 = vset.pattern.permute.xlu0 0
  %1280 = vperm.xlu0 %1279, %v1056
  %v1281 = vpop.permute.xlu0 %1280
  %1284 = vset.pattern.permute.xlu0 0
  %1285 = vperm.xlu0 %1284, %v1057
  %v1286 = vpop.permute.xlu0 %1285
  %1289 = vset.pattern.permute.xlu0 0
  %1290 = vperm.xlu0 %1289, %v1058
  %v1291 = vpop.permute.xlu0 %1290
  %1294 = vset.pattern.permute.xlu0 0
  %1295 = vperm.xlu0 %1294, %v1059
  %v1296 = vpop.permute.xlu0 %1295
  %1299 = vset.pattern.permute.xlu0 0
  %1300 = vperm.xlu0 %1299, %v1060
  %v1301 = vpop.permute.xlu0 %1300
  %1304 = vset.pattern.permute.xlu0 0
  %1305 = vperm.xlu0 %1304, %v1061
  %v1306 = vpop.permute.xlu0 %1305
  %1309 = vset.pattern.permute.xlu0 0
  %1310 = vperm.xlu0 %1309, %v1062
  %v1311 = vpop.permute.xlu0 %1310
  %1314 = vset.pattern.permute.xlu0 0
  %1315 = vperm.xlu0 %1314, %v1063
  %v1316 = vpop.permute.xlu0 %1315
  %1319 = vset.pattern.permute.xlu0 0
  %1320 = vperm.xlu0 %1319, %v1064
  %v1321 = vpop.permute.xlu0 %1320
  %1324 = vset.pattern.permute.xlu0 0
  %1325 = vperm.xlu0 %1324, %v1065
  %v1326 = vpop.permute.xlu0 %1325
  %1329 = vset.pattern.permute.xlu0 0
  %1330 = vperm.xlu0 %1329, %v1066
  %v1331 = vpop.permute.xlu0 %1330
  %1334 = vset.pattern.permute.xlu0 0
  %1335 = vperm.xlu0 %1334, %v1067
  %v1336 = vpop.permute.xlu0 %1335
  %1339 = vset.pattern.permute.xlu0 0
  %1340 = vperm.xlu0 %1339, %v1068
  %v1341 = vpop.permute.xlu0 %1340
  %1344 = vset.pattern.permute.xlu0 0
  %1345 = vperm.xlu0 %1344, %v1069
  %v1346 = vpop.permute.xlu0 %1345
  %1349 = vset.pattern.permute.xlu0 0
  %1350 = vperm.xlu0 %1349, %v1070
  %v1351 = vpop.permute.xlu0 %1350
  %1354 = vset.pattern.permute.xlu0 0
  %1355 = vperm.xlu0 %1354, %v1071
  %v1356 = vpop.permute.xlu0 %1355
  %1359 = vset.pattern.permute.xlu0 0
  %1360 = vperm.xlu0 %1359, %v1072
  %v1361 = vpop.permute.xlu0 %1360
  %1364 = vset.pattern.permute.xlu0 0
  %1365 = vperm.xlu0 %1364, %v1073
  %v1366 = vpop.permute.xlu0 %1365
  %1369 = vset.pattern.permute.xlu0 0
  %1370 = vperm.xlu0 %1369, %v1074
  %v1371 = vpop.permute.xlu0 %1370
  %1374 = vset.pattern.permute.xlu0 0
  %1375 = vperm.xlu0 %1374, %v1075
  %v1376 = vpop.permute.xlu0 %1375
  %1379 = vset.pattern.permute.xlu0 0
  %1380 = vperm.xlu0 %1379, %v1076
  %v1381 = vpop.permute.xlu0 %1380
  %1384 = vset.pattern.permute.xlu0 0
  %1385 = vperm.xlu0 %1384, %v1077
  %v1386 = vpop.permute.xlu0 %1385
  %1389 = vset.pattern.permute.xlu0 0
  %1390 = vperm.xlu0 %1389, %v1078
  %v1391 = vpop.permute.xlu0 %1390
  %1394 = vset.pattern.permute.xlu0 0
  %1395 = vperm.xlu0 %1394, %v1079
  %v1396 = vpop.permute.xlu0 %1395
  %1399 = vset.pattern.permute.xlu0 0
  %1400 = vperm.xlu0 %1399, %v1080
  %v1401 = vpop.permute.xlu0 %1400
  %1404 = vset.pattern.permute.xlu0 0
  %1405 = vperm.xlu0 %1404, %v1081
  %v1406 = vpop.permute.xlu0 %1405
  %1409 = vset.pattern.permute.xlu0 0
  %1410 = vperm.xlu0 %1409, %v1082
  %v1411 = vpop.permute.xlu0 %1410
  %1414 = vset.pattern.permute.xlu0 0
  %1415 = vperm.xlu0 %1414, %v1083
  %v1416 = vpop.permute.xlu0 %1415
  %1419 = vset.pattern.permute.xlu0 0
  %1420 = vperm.xlu0 %1419, %v1084
  %v1421 = vpop.permute.xlu0 %1420
  %1424 = vset.pattern.permute.xlu0 0
  %1425 = vperm.xlu0 %1424, %v1085
  %v1426 = vpop.permute.xlu0 %1425
  %1429 = vset.pattern.permute.xlu0 0
  %1430 = vperm.xlu0 %1429, %v1086
  %v1431 = vpop.permute.xlu0 %1430
  %1434 = vset.pattern.permute.xlu0 0
  %1435 = vperm.xlu0 %1434, %v1087
  %v1436 = vpop.permute.xlu0 %1435
  %1439 = vset.pattern.permute.xlu0 0
  %1440 = vperm.xlu0 %1439, %v1088
  %v1441 = vpop.permute.xlu0 %1440
  %1444 = vset.pattern.permute.xlu0 0
  %1445 = vperm.xlu0 %1444, %v1089
  %v1446 = vpop.permute.xlu0 %1445
  %1449 = vset.pattern.permute.xlu0 0
  %1450 = vperm.xlu0 %1449, %v1090
  %v1451 = vpop.permute.xlu0 %1450
  %1454 = vset.pattern.permute.xlu0 0
  %1455 = vperm.xlu0 %1454, %v1091
  %v1456 = vpop.permute.xlu0 %1455
  %1459 = vset.pattern.permute.xlu0 0
  %1460 = vperm.xlu0 %1459, %v1092
  %v1461 = vpop.permute.xlu0 %1460
  %1464 = vset.pattern.permute.xlu0 0
  %1465 = vperm.xlu0 %1464, %v1093
  %v1466 = vpop.permute.xlu0 %1465
  %1469 = vset.pattern.permute.xlu0 0
  %1470 = vperm.xlu0 %1469, %v1094
  %v1471 = vpop.permute.xlu0 %1470
  %v1473 = vmul.f32 %v1206, %v393
  %v1474 = vmul.f32 %v1206, %v394
  %v1475 = vmul.f32 %v1211, %v395
  %v1476 = vmul.f32 %v1211, %v396
  %v1477 = vmul.f32 %v1216, %v397
  %v1478 = vmul.f32 %v1216, %v398
  %v1479 = vmul.f32 %v1221, %v399
  %v1480 = vmul.f32 %v1221, %v400
  %v1481 = vmul.f32 %v1226, %v401
  %v1482 = vmul.f32 %v1226, %v402
  %v1483 = vmul.f32 %v1231, %v403
  %v1484 = vmul.f32 %v1231, %v404
  %v1485 = vmul.f32 %v1236, %v405
  %v1486 = vmul.f32 %v1236, %v406
  %v1487 = vmul.f32 %v1241, %v407
  %v1488 = vmul.f32 %v1241, %v408
  %v1489 = vmul.f32 %v1246, %v409
  %v1490 = vmul.f32 %v1246, %v410
  %v1491 = vmul.f32 %v1251, %v411
  %v1492 = vmul.f32 %v1251, %v412
  %v1493 = vmul.f32 %v1256, %v413
  %v1494 = vmul.f32 %v1256, %v414
  %v1495 = vmul.f32 %v1261, %v415
  %v1496 = vmul.f32 %v1261, %v416
  %v1497 = vmul.f32 %v1266, %v417
  %v1498 = vmul.f32 %v1266, %v418
  %v1499 = vmul.f32 %v1271, %v419
  %v1500 = vmul.f32 %v1271, %v420
  %v1501 = vmul.f32 %v1276, %v421
  %v1502 = vmul.f32 %v1276, %v422
  %v1503 = vmul.f32 %v1281, %v423
  %v1504 = vmul.f32 %v1281, %v424
  %v1505 = vmul.f32 %v1286, %v425
  %v1506 = vmul.f32 %v1286, %v426
  %v1507 = vmul.f32 %v1291, %v427
  %v1508 = vmul.f32 %v1291, %v428
  %v1509 = vmul.f32 %v1296, %v429
  %v1510 = vmul.f32 %v1296, %v430
  %v1511 = vmul.f32 %v1301, %v431
  %v1512 = vmul.f32 %v1301, %v432
  %v1513 = vmul.f32 %v1306, %v433
  %v1514 = vmul.f32 %v1306, %v434
  %v1515 = vmul.f32 %v1311, %v435
  %v1516 = vmul.f32 %v1311, %v436
  %v1517 = vmul.f32 %v1316, %v437
  %v1518 = vmul.f32 %v1316, %v438
  %v1519 = vmul.f32 %v1321, %v439
  %v1520 = vmul.f32 %v1321, %v440
  %v1521 = vmul.f32 %v1326, %v441
  %v1522 = vmul.f32 %v1326, %v442
  %v1523 = vmul.f32 %v1331, %v443
  %v1524 = vmul.f32 %v1331, %v444
  %v1525 = vmul.f32 %v1336, %v445
  %v1526 = vmul.f32 %v1336, %v446
  %v1527 = vmul.f32 %v1341, %v447
  %v1528 = vmul.f32 %v1341, %v448
  %v1529 = vmul.f32 %v1346, %v449
  %v1530 = vmul.f32 %v1346, %v450
  %v1531 = vmul.f32 %v1351, %v451
  %v1532 = vmul.f32 %v1351, %v452
  %v1533 = vmul.f32 %v1356, %v453
  %v1534 = vmul.f32 %v1356, %v454
  %v1535 = vmul.f32 %v1361, %v455
  %v1536 = vmul.f32 %v1361, %v456
  %v1537 = vmul.f32 %v1366, %v457
  %v1538 = vmul.f32 %v1366, %v458
  %v1539 = vmul.f32 %v1371, %v459
  %v1540 = vmul.f32 %v1371, %v460
  %v1541 = vmul.f32 %v1376, %v461
  %v1542 = vmul.f32 %v1376, %v462
  %v1543 = vmul.f32 %v1381, %v463
  %v1544 = vmul.f32 %v1381, %v464
  %v1545 = vmul.f32 %v1386, %v465
  %v1546 = vmul.f32 %v1386, %v466
  %v1547 = vmul.f32 %v1391, %v467
  %v1548 = vmul.f32 %v1391, %v468
  %v1549 = vmul.f32 %v1396, %v469
  %v1550 = vmul.f32 %v1396, %v470
  %v1551 = vmul.f32 %v1401, %v471
  %v1552 = vmul.f32 %v1401, %v472
  %v1553 = vmul.f32 %v1406, %v473
  %v1554 = vmul.f32 %v1406, %v474
  %v1555 = vmul.f32 %v1411, %v475
  %v1556 = vmul.f32 %v1411, %v476
  %v1557 = vmul.f32 %v1416, %v477
  %v1558 = vmul.f32 %v1416, %v478
  %v1559 = vmul.f32 %v1421, %v479
  %v1560 = vmul.f32 %v1421, %v480
  %v1561 = vmul.f32 %v1426, %v481
  %v1562 = vmul.f32 %v1426, %v482
  %v1563 = vmul.f32 %v1431, %v483
  %v1564 = vmul.f32 %v1431, %v484
  %v1565 = vmul.f32 %v1436, %v485
  %v1566 = vmul.f32 %v1436, %v486
  %v1567 = vmul.f32 %v1441, %v487
  %v1568 = vmul.f32 %v1441, %v488
  %v1569 = vmul.f32 %v1446, %v489
  %v1570 = vmul.f32 %v1446, %v490
  %v1571 = vmul.f32 %v1451, %v491
  %v1572 = vmul.f32 %v1451, %v492
  %v1573 = vmul.f32 %v1456, %v493
  %v1574 = vmul.f32 %v1456, %v494
  %v1575 = vmul.f32 %v1461, %v495
  %v1576 = vmul.f32 %v1461, %v496
  %v1577 = vmul.f32 %v1466, %v497
  %v1578 = vmul.f32 %v1466, %v498
  %v1579 = vmul.f32 %v1471, %v499
  %v1580 = vmul.f32 %v1471, %v500
  %v1581 = vadd.f32 %v1095, %v1473
  %v1582 = vadd.f32 %v1096, %v1474
  %v1583 = vadd.f32 %v1097, %v1475
  %v1584 = vadd.f32 %v1098, %v1476
  %v1585 = vadd.f32 %v1099, %v1477
  %v1586 = vadd.f32 %v1100, %v1478
  %v1587 = vadd.f32 %v1101, %v1479
  %v1588 = vadd.f32 %v1102, %v1480
  %v1589 = vadd.f32 %v1103, %v1481
  %v1590 = vadd.f32 %v1104, %v1482
  %v1591 = vadd.f32 %v1105, %v1483
  %v1592 = vadd.f32 %v1106, %v1484
  %v1593 = vadd.f32 %v1107, %v1485
  %v1594 = vadd.f32 %v1108, %v1486
  %v1595 = vadd.f32 %v1109, %v1487
  %v1596 = vadd.f32 %v1110, %v1488
  %v1597 = vadd.f32 %v1111, %v1489
  %v1598 = vadd.f32 %v1112, %v1490
  %v1599 = vadd.f32 %v1113, %v1491
  %v1600 = vadd.f32 %v1114, %v1492
  %v1601 = vadd.f32 %v1115, %v1493
  %v1602 = vadd.f32 %v1116, %v1494
  %v1603 = vadd.f32 %v1117, %v1495
  %v1604 = vadd.f32 %v1118, %v1496
  %v1605 = vadd.f32 %v1119, %v1497
  %v1606 = vadd.f32 %v1120, %v1498
  %v1607 = vadd.f32 %v1121, %v1499
  %v1608 = vadd.f32 %v1122, %v1500
  %v1609 = vadd.f32 %v1123, %v1501
  %v1610 = vadd.f32 %v1124, %v1502
  %v1611 = vadd.f32 %v1125, %v1503
  %v1612 = vadd.f32 %v1126, %v1504
  %v1613 = vadd.f32 %v1127, %v1505
  %v1614 = vadd.f32 %v1128, %v1506
  %v1615 = vadd.f32 %v1129, %v1507
  %v1616 = vadd.f32 %v1130, %v1508
  %v1617 = vadd.f32 %v1131, %v1509
  %v1618 = vadd.f32 %v1132, %v1510
  %v1619 = vadd.f32 %v1133, %v1511
  %v1620 = vadd.f32 %v1134, %v1512
  %v1621 = vadd.f32 %v1135, %v1513
  %v1622 = vadd.f32 %v1136, %v1514
  %v1623 = vadd.f32 %v1137, %v1515
  %v1624 = vadd.f32 %v1138, %v1516
  %v1625 = vadd.f32 %v1139, %v1517
  %v1626 = vadd.f32 %v1140, %v1518
  %v1627 = vadd.f32 %v1141, %v1519
  %v1628 = vadd.f32 %v1142, %v1520
  %v1629 = vadd.f32 %v1143, %v1521
  %v1630 = vadd.f32 %v1144, %v1522
  %v1631 = vadd.f32 %v1145, %v1523
  %v1632 = vadd.f32 %v1146, %v1524
  %v1633 = vadd.f32 %v1147, %v1525
  %v1634 = vadd.f32 %v1148, %v1526
  %v1635 = vadd.f32 %v1149, %v1527
  %v1636 = vadd.f32 %v1150, %v1528
  %v1637 = vadd.f32 %v1151, %v1529
  %v1638 = vadd.f32 %v1152, %v1530
  %v1639 = vadd.f32 %v1153, %v1531
  %v1640 = vadd.f32 %v1154, %v1532
  %v1641 = vadd.f32 %v1155, %v1533
  %v1642 = vadd.f32 %v1156, %v1534
  %v1643 = vadd.f32 %v1157, %v1535
  %v1644 = vadd.f32 %v1158, %v1536
  %v1645 = vadd.f32 %v1159, %v1537
  %v1646 = vadd.f32 %v1160, %v1538
  %v1647 = vadd.f32 %v1161, %v1539
  %v1648 = vadd.f32 %v1162, %v1540
  %v1649 = vadd.f32 %v1163, %v1541
  %v1650 = vadd.f32 %v1164, %v1542
  %v1651 = vadd.f32 %v1165, %v1543
  %v1652 = vadd.f32 %v1166, %v1544
  %v1653 = vadd.f32 %v1167, %v1545
  %v1654 = vadd.f32 %v1168, %v1546
  %v1655 = vadd.f32 %v1169, %v1547
  %v1656 = vadd.f32 %v1170, %v1548
  %v1657 = vadd.f32 %v1171, %v1549
  %v1658 = vadd.f32 %v1172, %v1550
  %v1659 = vadd.f32 %v1173, %v1551
  %v1660 = vadd.f32 %v1174, %v1552
  %v1661 = vadd.f32 %v1175, %v1553
  %v1662 = vadd.f32 %v1176, %v1554
  %v1663 = vadd.f32 %v1177, %v1555
  %v1664 = vadd.f32 %v1178, %v1556
  %v1665 = vadd.f32 %v1179, %v1557
  %v1666 = vadd.f32 %v1180, %v1558
  %v1667 = vadd.f32 %v1181, %v1559
  %v1668 = vadd.f32 %v1182, %v1560
  %v1669 = vadd.f32 %v1183, %v1561
  %v1670 = vadd.f32 %v1184, %v1562
  %v1671 = vadd.f32 %v1185, %v1563
  %v1672 = vadd.f32 %v1186, %v1564
  %v1673 = vadd.f32 %v1187, %v1565
  %v1674 = vadd.f32 %v1188, %v1566
  %v1675 = vadd.f32 %v1189, %v1567
  %v1676 = vadd.f32 %v1190, %v1568
  %v1677 = vadd.f32 %v1191, %v1569
  %v1678 = vadd.f32 %v1192, %v1570
  %v1679 = vadd.f32 %v1193, %v1571
  %v1680 = vadd.f32 %v1194, %v1572
  %v1681 = vadd.f32 %v1195, %v1573
  %v1682 = vadd.f32 %v1196, %v1574
  %v1683 = vadd.f32 %v1197, %v1575
  %v1684 = vadd.f32 %v1198, %v1576
  %v1685 = vadd.f32 %v1199, %v1577
  %v1686 = vadd.f32 %v1200, %v1578
  %v1687 = vadd.f32 %v1201, %v1579
  %v1688 = vadd.f32 %v1202, %v1580
  %1690 = vset.pattern.permute.xlu0 1
  %1691 = vperm.xlu0 %1690, %v987
  %v1692 = vpop.permute.xlu0 %1691
  %1695 = vset.pattern.permute.xlu0 1
  %1696 = vperm.xlu0 %1695, %v988
  %v1697 = vpop.permute.xlu0 %1696
  %1700 = vset.pattern.permute.xlu0 1
  %1701 = vperm.xlu0 %1700, %v989
  %v1702 = vpop.permute.xlu0 %1701
  %1705 = vset.pattern.permute.xlu0 1
  %1706 = vperm.xlu0 %1705, %v990
  %v1707 = vpop.permute.xlu0 %1706
  %1710 = vset.pattern.permute.xlu0 1
  %1711 = vperm.xlu0 %1710, %v991
  %v1712 = vpop.permute.xlu0 %1711
  %1715 = vset.pattern.permute.xlu0 1
  %1716 = vperm.xlu0 %1715, %v992
  %v1717 = vpop.permute.xlu0 %1716
  %1720 = vset.pattern.permute.xlu0 1
  %1721 = vperm.xlu0 %1720, %v993
  %v1722 = vpop.permute.xlu0 %1721
  %1725 = vset.pattern.permute.xlu0 1
  %1726 = vperm.xlu0 %1725, %v994
  %v1727 = vpop.permute.xlu0 %1726
  %1730 = vset.pattern.permute.xlu0 1
  %1731 = vperm.xlu0 %1730, %v995
  %v1732 = vpop.permute.xlu0 %1731
  %1735 = vset.pattern.permute.xlu0 1
  %1736 = vperm.xlu0 %1735, %v996
  %v1737 = vpop.permute.xlu0 %1736
  %1740 = vset.pattern.permute.xlu0 1
  %1741 = vperm.xlu0 %1740, %v997
  %v1742 = vpop.permute.xlu0 %1741
  %1745 = vset.pattern.permute.xlu0 1
  %1746 = vperm.xlu0 %1745, %v998
  %v1747 = vpop.permute.xlu0 %1746
  %1750 = vset.pattern.permute.xlu0 1
  %1751 = vperm.xlu0 %1750, %v999
  %v1752 = vpop.permute.xlu0 %1751
  %1755 = vset.pattern.permute.xlu0 1
  %1756 = vperm.xlu0 %1755, %v1000
  %v1757 = vpop.permute.xlu0 %1756
  %1760 = vset.pattern.permute.xlu0 1
  %1761 = vperm.xlu0 %1760, %v1001
  %v1762 = vpop.permute.xlu0 %1761
  %1765 = vset.pattern.permute.xlu0 1
  %1766 = vperm.xlu0 %1765, %v1002
  %v1767 = vpop.permute.xlu0 %1766
  %1770 = vset.pattern.permute.xlu0 1
  %1771 = vperm.xlu0 %1770, %v1003
  %v1772 = vpop.permute.xlu0 %1771
  %1775 = vset.pattern.permute.xlu0 1
  %1776 = vperm.xlu0 %1775, %v1004
  %v1777 = vpop.permute.xlu0 %1776
  %1780 = vset.pattern.permute.xlu0 1
  %1781 = vperm.xlu0 %1780, %v1005
  %v1782 = vpop.permute.xlu0 %1781
  %1785 = vset.pattern.permute.xlu0 1
  %1786 = vperm.xlu0 %1785, %v1006
  %v1787 = vpop.permute.xlu0 %1786
  %1790 = vset.pattern.permute.xlu0 1
  %1791 = vperm.xlu0 %1790, %v1007
  %v1792 = vpop.permute.xlu0 %1791
  %1795 = vset.pattern.permute.xlu0 1
  %1796 = vperm.xlu0 %1795, %v1008
  %v1797 = vpop.permute.xlu0 %1796
  %1800 = vset.pattern.permute.xlu0 1
  %1801 = vperm.xlu0 %1800, %v1009
  %v1802 = vpop.permute.xlu0 %1801
  %1805 = vset.pattern.permute.xlu0 1
  %1806 = vperm.xlu0 %1805, %v1010
  %v1807 = vpop.permute.xlu0 %1806
  %1810 = vset.pattern.permute.xlu0 1
  %1811 = vperm.xlu0 %1810, %v1011
  %v1812 = vpop.permute.xlu0 %1811
  %1815 = vset.pattern.permute.xlu0 1
  %1816 = vperm.xlu0 %1815, %v1012
  %v1817 = vpop.permute.xlu0 %1816
  %1820 = vset.pattern.permute.xlu0 1
  %1821 = vperm.xlu0 %1820, %v1013
  %v1822 = vpop.permute.xlu0 %1821
  %1825 = vset.pattern.permute.xlu0 1
  %1826 = vperm.xlu0 %1825, %v1014
  %v1827 = vpop.permute.xlu0 %1826
  %1830 = vset.pattern.permute.xlu0 1
  %1831 = vperm.xlu0 %1830, %v1015
  %v1832 = vpop.permute.xlu0 %1831
  %1835 = vset.pattern.permute.xlu0 1
  %1836 = vperm.xlu0 %1835, %v1016
  %v1837 = vpop.permute.xlu0 %1836
  %1840 = vset.pattern.permute.xlu0 1
  %1841 = vperm.xlu0 %1840, %v1017
  %v1842 = vpop.permute.xlu0 %1841
  %1845 = vset.pattern.permute.xlu0 1
  %1846 = vperm.xlu0 %1845, %v1018
  %v1847 = vpop.permute.xlu0 %1846
  %1850 = vset.pattern.permute.xlu0 1
  %1851 = vperm.xlu0 %1850, %v1019
  %v1852 = vpop.permute.xlu0 %1851
  %1855 = vset.pattern.permute.xlu0 1
  %1856 = vperm.xlu0 %1855, %v1020
  %v1857 = vpop.permute.xlu0 %1856
  %1860 = vset.pattern.permute.xlu0 1
  %1861 = vperm.xlu0 %1860, %v1021
  %v1862 = vpop.permute.xlu0 %1861
  %1865 = vset.pattern.permute.xlu0 1
  %1866 = vperm.xlu0 %1865, %v1022
  %v1867 = vpop.permute.xlu0 %1866
  %1870 = vset.pattern.permute.xlu0 1
  %1871 = vperm.xlu0 %1870, %v1023
  %v1872 = vpop.permute.xlu0 %1871
  %1875 = vset.pattern.permute.xlu0 1
  %1876 = vperm.xlu0 %1875, %v1024
  %v1877 = vpop.permute.xlu0 %1876
  %1880 = vset.pattern.permute.xlu0 1
  %1881 = vperm.xlu0 %1880, %v1025
  %v1882 = vpop.permute.xlu0 %1881
  %1885 = vset.pattern.permute.xlu0 1
  %1886 = vperm.xlu0 %1885, %v1026
  %v1887 = vpop.permute.xlu0 %1886
  %1890 = vset.pattern.permute.xlu0 1
  %1891 = vperm.xlu0 %1890, %v1027
  %v1892 = vpop.permute.xlu0 %1891
  %1895 = vset.pattern.permute.xlu0 1
  %1896 = vperm.xlu0 %1895, %v1028
  %v1897 = vpop.permute.xlu0 %1896
  %1900 = vset.pattern.permute.xlu0 1
  %1901 = vperm.xlu0 %1900, %v1029
  %v1902 = vpop.permute.xlu0 %1901
  %1905 = vset.pattern.permute.xlu0 1
  %1906 = vperm.xlu0 %1905, %v1030
  %v1907 = vpop.permute.xlu0 %1906
  %1910 = vset.pattern.permute.xlu0 1
  %1911 = vperm.xlu0 %1910, %v1031
  %v1912 = vpop.permute.xlu0 %1911
  %1915 = vset.pattern.permute.xlu0 1
  %1916 = vperm.xlu0 %1915, %v1032
  %v1917 = vpop.permute.xlu0 %1916
  %1920 = vset.pattern.permute.xlu0 1
  %1921 = vperm.xlu0 %1920, %v1033
  %v1922 = vpop.permute.xlu0 %1921
  %1925 = vset.pattern.permute.xlu0 1
  %1926 = vperm.xlu0 %1925, %v1034
  %v1927 = vpop.permute.xlu0 %1926
  %1930 = vset.pattern.permute.xlu0 1
  %1931 = vperm.xlu0 %1930, %v1035
  %v1932 = vpop.permute.xlu0 %1931
  %1935 = vset.pattern.permute.xlu0 1
  %1936 = vperm.xlu0 %1935, %v1036
  %v1937 = vpop.permute.xlu0 %1936
  %1940 = vset.pattern.permute.xlu0 1
  %1941 = vperm.xlu0 %1940, %v1037
  %v1942 = vpop.permute.xlu0 %1941
  %1945 = vset.pattern.permute.xlu0 1
  %1946 = vperm.xlu0 %1945, %v1038
  %v1947 = vpop.permute.xlu0 %1946
  %1950 = vset.pattern.permute.xlu0 1
  %1951 = vperm.xlu0 %1950, %v1039
  %v1952 = vpop.permute.xlu0 %1951
  %1955 = vset.pattern.permute.xlu0 1
  %1956 = vperm.xlu0 %1955, %v1040
  %v1957 = vpop.permute.xlu0 %1956
  %v1959 = vadd.f32 %v1581, %v1692
  %v1960 = vadd.f32 %v1582, %v1692
  %v1961 = vadd.f32 %v1583, %v1697
  %v1962 = vadd.f32 %v1584, %v1697
  %v1963 = vadd.f32 %v1585, %v1702
  %v1964 = vadd.f32 %v1586, %v1702
  %v1965 = vadd.f32 %v1587, %v1707
  %v1966 = vadd.f32 %v1588, %v1707
  %v1967 = vadd.f32 %v1589, %v1712
  %v1968 = vadd.f32 %v1590, %v1712
  %v1969 = vadd.f32 %v1591, %v1717
  %v1970 = vadd.f32 %v1592, %v1717
  %v1971 = vadd.f32 %v1593, %v1722
  %v1972 = vadd.f32 %v1594, %v1722
  %v1973 = vadd.f32 %v1595, %v1727
  %v1974 = vadd.f32 %v1596, %v1727
  %v1975 = vadd.f32 %v1597, %v1732
  %v1976 = vadd.f32 %v1598, %v1732
  %v1977 = vadd.f32 %v1599, %v1737
  %v1978 = vadd.f32 %v1600, %v1737
  %v1979 = vadd.f32 %v1601, %v1742
  %v1980 = vadd.f32 %v1602, %v1742
  %v1981 = vadd.f32 %v1603, %v1747
  %v1982 = vadd.f32 %v1604, %v1747
  %v1983 = vadd.f32 %v1605, %v1752
  %v1984 = vadd.f32 %v1606, %v1752
  %v1985 = vadd.f32 %v1607, %v1757
  %v1986 = vadd.f32 %v1608, %v1757
  %v1987 = vadd.f32 %v1609, %v1762
  %v1988 = vadd.f32 %v1610, %v1762
  %v1989 = vadd.f32 %v1611, %v1767
  %v1990 = vadd.f32 %v1612, %v1767
  %v1991 = vadd.f32 %v1613, %v1772
  %v1992 = vadd.f32 %v1614, %v1772
  %v1993 = vadd.f32 %v1615, %v1777
  %v1994 = vadd.f32 %v1616, %v1777
  %v1995 = vadd.f32 %v1617, %v1782
  %v1996 = vadd.f32 %v1618, %v1782
  %v1997 = vadd.f32 %v1619, %v1787
  %v1998 = vadd.f32 %v1620, %v1787
  %v1999 = vadd.f32 %v1621, %v1792
  %v2000 = vadd.f32 %v1622, %v1792
  %v2001 = vadd.f32 %v1623, %v1797
  %v2002 = vadd.f32 %v1624, %v1797
  %v2003 = vadd.f32 %v1625, %v1802
  %v2004 = vadd.f32 %v1626, %v1802
  %v2005 = vadd.f32 %v1627, %v1807
  %v2006 = vadd.f32 %v1628, %v1807
  %v2007 = vadd.f32 %v1629, %v1812
  %v2008 = vadd.f32 %v1630, %v1812
  %v2009 = vadd.f32 %v1631, %v1817
  %v2010 = vadd.f32 %v1632, %v1817
  %v2011 = vadd.f32 %v1633, %v1822
  %v2012 = vadd.f32 %v1634, %v1822
  %v2013 = vadd.f32 %v1635, %v1827
  %v2014 = vadd.f32 %v1636, %v1827
  %v2015 = vadd.f32 %v1637, %v1832
  %v2016 = vadd.f32 %v1638, %v1832
  %v2017 = vadd.f32 %v1639, %v1837
  %v2018 = vadd.f32 %v1640, %v1837
  %v2019 = vadd.f32 %v1641, %v1842
  %v2020 = vadd.f32 %v1642, %v1842
  %v2021 = vadd.f32 %v1643, %v1847
  %v2022 = vadd.f32 %v1644, %v1847
  %v2023 = vadd.f32 %v1645, %v1852
  %v2024 = vadd.f32 %v1646, %v1852
  %v2025 = vadd.f32 %v1647, %v1857
  %v2026 = vadd.f32 %v1648, %v1857
  %v2027 = vadd.f32 %v1649, %v1862
  %v2028 = vadd.f32 %v1650, %v1862
  %v2029 = vadd.f32 %v1651, %v1867
  %v2030 = vadd.f32 %v1652, %v1867
  %v2031 = vadd.f32 %v1653, %v1872
  %v2032 = vadd.f32 %v1654, %v1872
  %v2033 = vadd.f32 %v1655, %v1877
  %v2034 = vadd.f32 %v1656, %v1877
  %v2035 = vadd.f32 %v1657, %v1882
  %v2036 = vadd.f32 %v1658, %v1882
  %v2037 = vadd.f32 %v1659, %v1887
  %v2038 = vadd.f32 %v1660, %v1887
  %v2039 = vadd.f32 %v1661, %v1892
  %v2040 = vadd.f32 %v1662, %v1892
  %v2041 = vadd.f32 %v1663, %v1897
  %v2042 = vadd.f32 %v1664, %v1897
  %v2043 = vadd.f32 %v1665, %v1902
  %v2044 = vadd.f32 %v1666, %v1902
  %v2045 = vadd.f32 %v1667, %v1907
  %v2046 = vadd.f32 %v1668, %v1907
  %v2047 = vadd.f32 %v1669, %v1912
  %v2048 = vadd.f32 %v1670, %v1912
  %v2049 = vadd.f32 %v1671, %v1917
  %v2050 = vadd.f32 %v1672, %v1917
  %v2051 = vadd.f32 %v1673, %v1922
  %v2052 = vadd.f32 %v1674, %v1922
  %v2053 = vadd.f32 %v1675, %v1927
  %v2054 = vadd.f32 %v1676, %v1927
  %v2055 = vadd.f32 %v1677, %v1932
  %v2056 = vadd.f32 %v1678, %v1932
  %v2057 = vadd.f32 %v1679, %v1937
  %v2058 = vadd.f32 %v1680, %v1937
  %v2059 = vadd.f32 %v1681, %v1942
  %v2060 = vadd.f32 %v1682, %v1942
  %v2061 = vadd.f32 %v1683, %v1947
  %v2062 = vadd.f32 %v1684, %v1947
  %v2063 = vadd.f32 %v1685, %v1952
  %v2064 = vadd.f32 %v1686, %v1952
  %v2065 = vadd.f32 %v1687, %v1957
  %v2066 = vadd.f32 %v1688, %v1957
  %2067 = vst [vmem:[%s3] sm:$0xff] %v1959
  %2068 = vst.msk [vmem:[%s3 + $0x8] sm:$0xff] %vm122, %v1960
  %2069 = vst [vmem:[%s3 + $0x10] sm:$0xff] %v1961
  %2070 = vst.msk [vmem:[%s3 + $0x18] sm:$0xff] %vm122, %v1962
  %2071 = vst [vmem:[%s3 + $0x20] sm:$0xff] %v1963
  %2072 = vst.msk [vmem:[%s3 + $0x28] sm:$0xff] %vm122, %v1964
  %2073 = vst [vmem:[%s3 + $0x30] sm:$0xff] %v1965
  %2074 = vst.msk [vmem:[%s3 + $0x38] sm:$0xff] %vm122, %v1966
  %2075 = vst [vmem:[%s3 + $0x40] sm:$0xff] %v1967
  %2076 = vst.msk [vmem:[%s3 + $0x48] sm:$0xff] %vm122, %v1968
  %2077 = vst [vmem:[%s3 + $0x50] sm:$0xff] %v1969
  %2078 = vst.msk [vmem:[%s3 + $0x58] sm:$0xff] %vm122, %v1970
  %2079 = vst [vmem:[%s3 + $0x60] sm:$0xff] %v1971
  %2080 = vst.msk [vmem:[%s3 + $0x68] sm:$0xff] %vm122, %v1972
  %2081 = vst [vmem:[%s3 + $0x70] sm:$0xff] %v1973
  %2082 = vst.msk [vmem:[%s3 + $0x78] sm:$0xff] %vm122, %v1974
  %2083 = vst [vmem:[%s3 + $0x80] sm:$0xff] %v1975
  %2084 = vst.msk [vmem:[%s3 + $0x88] sm:$0xff] %vm122, %v1976
  %2085 = vst [vmem:[%s3 + $0x90] sm:$0xff] %v1977
  %2086 = vst.msk [vmem:[%s3 + $0x98] sm:$0xff] %vm122, %v1978
  %2087 = vst [vmem:[%s3 + $0xa0] sm:$0xff] %v1979
  %2088 = vst.msk [vmem:[%s3 + $0xa8] sm:$0xff] %vm122, %v1980
  %2089 = vst [vmem:[%s3 + $0xb0] sm:$0xff] %v1981
  %2090 = vst.msk [vmem:[%s3 + $0xb8] sm:$0xff] %vm122, %v1982
  %2091 = vst [vmem:[%s3 + $0xc0] sm:$0xff] %v1983
  %2092 = vst.msk [vmem:[%s3 + $0xc8] sm:$0xff] %vm122, %v1984
  %2093 = vst [vmem:[%s3 + $0xd0] sm:$0xff] %v1985
  %2094 = vst.msk [vmem:[%s3 + $0xd8] sm:$0xff] %vm122, %v1986
  %2095 = vst [vmem:[%s3 + $0xe0] sm:$0xff] %v1987
  %2096 = vst.msk [vmem:[%s3 + $0xe8] sm:$0xff] %vm122, %v1988
  %2097 = vst [vmem:[%s3 + $0xf0] sm:$0xff] %v1989
  %2098 = vst.msk [vmem:[%s3 + $0xf8] sm:$0xff] %vm122, %v1990
  %2099 = vst [vmem:[%s3 + $0x100] sm:$0xff] %v1991
  %2100 = vst.msk [vmem:[%s3 + $0x108] sm:$0xff] %vm122, %v1992
  %2101 = vst [vmem:[%s3 + $0x110] sm:$0xff] %v1993
  %2102 = vst.msk [vmem:[%s3 + $0x118] sm:$0xff] %vm122, %v1994
  %2103 = vst [vmem:[%s3 + $0x120] sm:$0xff] %v1995
  %2104 = vst.msk [vmem:[%s3 + $0x128] sm:$0xff] %vm122, %v1996
  %2105 = vst [vmem:[%s3 + $0x130] sm:$0xff] %v1997
  %2106 = vst.msk [vmem:[%s3 + $0x138] sm:$0xff] %vm122, %v1998
  %2107 = vst [vmem:[%s3 + $0x140] sm:$0xff] %v1999
  %2108 = vst.msk [vmem:[%s3 + $0x148] sm:$0xff] %vm122, %v2000
  %2109 = vst [vmem:[%s3 + $0x150] sm:$0xff] %v2001
  %2110 = vst.msk [vmem:[%s3 + $0x158] sm:$0xff] %vm122, %v2002
  %2111 = vst [vmem:[%s3 + $0x160] sm:$0xff] %v2003
  %2112 = vst.msk [vmem:[%s3 + $0x168] sm:$0xff] %vm122, %v2004
  %2113 = vst [vmem:[%s3 + $0x170] sm:$0xff] %v2005
  %2114 = vst.msk [vmem:[%s3 + $0x178] sm:$0xff] %vm122, %v2006
  %2115 = vst [vmem:[%s3 + $0x180] sm:$0xff] %v2007
  %2116 = vst.msk [vmem:[%s3 + $0x188] sm:$0xff] %vm122, %v2008
  %2117 = vst [vmem:[%s3 + $0x190] sm:$0xff] %v2009
  %2118 = vst.msk [vmem:[%s3 + $0x198] sm:$0xff] %vm122, %v2010
  %2119 = vst [vmem:[%s3 + $0x1a0] sm:$0xff] %v2011
  %2120 = vst.msk [vmem:[%s3 + $0x1a8] sm:$0xff] %vm122, %v2012
  %2121 = vst [vmem:[%s3 + $0x1b0] sm:$0xff] %v2013
  %2122 = vst.msk [vmem:[%s3 + $0x1b8] sm:$0xff] %vm122, %v2014
  %2123 = vst [vmem:[%s3 + $0x1c0] sm:$0xff] %v2015
  %2124 = vst.msk [vmem:[%s3 + $0x1c8] sm:$0xff] %vm122, %v2016
  %2125 = vst [vmem:[%s3 + $0x1d0] sm:$0xff] %v2017
  %2126 = vst.msk [vmem:[%s3 + $0x1d8] sm:$0xff] %vm122, %v2018
  %2127 = vst [vmem:[%s3 + $0x1e0] sm:$0xff] %v2019
  %2128 = vst.msk [vmem:[%s3 + $0x1e8] sm:$0xff] %vm122, %v2020
  %2129 = vst [vmem:[%s3 + $0x1f0] sm:$0xff] %v2021
  %2130 = vst.msk [vmem:[%s3 + $0x1f8] sm:$0xff] %vm122, %v2022
  %2131 = vst [vmem:[%s3 + $0x200] sm:$0xff] %v2023
  %2132 = vst.msk [vmem:[%s3 + $0x208] sm:$0xff] %vm122, %v2024
  %2133 = vst [vmem:[%s3 + $0x210] sm:$0xff] %v2025
  %2134 = vst.msk [vmem:[%s3 + $0x218] sm:$0xff] %vm122, %v2026
  %2135 = vst [vmem:[%s3 + $0x220] sm:$0xff] %v2027
  %2136 = vst.msk [vmem:[%s3 + $0x228] sm:$0xff] %vm122, %v2028
  %2137 = vst [vmem:[%s3 + $0x230] sm:$0xff] %v2029
  %2138 = vst.msk [vmem:[%s3 + $0x238] sm:$0xff] %vm122, %v2030
  %2139 = vst [vmem:[%s3 + $0x240] sm:$0xff] %v2031
  %2140 = vst.msk [vmem:[%s3 + $0x248] sm:$0xff] %vm122, %v2032
  %2141 = vst [vmem:[%s3 + $0x250] sm:$0xff] %v2033
  %2142 = vst.msk [vmem:[%s3 + $0x258] sm:$0xff] %vm122, %v2034
  %2143 = vst [vmem:[%s3 + $0x260] sm:$0xff] %v2035
  %2144 = vst.msk [vmem:[%s3 + $0x268] sm:$0xff] %vm122, %v2036
  %2145 = vst [vmem:[%s3 + $0x270] sm:$0xff] %v2037
  %2146 = vst.msk [vmem:[%s3 + $0x278] sm:$0xff] %vm122, %v2038
  %2147 = vst [vmem:[%s3 + $0x280] sm:$0xff] %v2039
  %2148 = vst.msk [vmem:[%s3 + $0x288] sm:$0xff] %vm122, %v2040
  %2149 = vst [vmem:[%s3 + $0x290] sm:$0xff] %v2041
  %2150 = vst.msk [vmem:[%s3 + $0x298] sm:$0xff] %vm122, %v2042
  %2151 = vst [vmem:[%s3 + $0x2a0] sm:$0xff] %v2043
  %2152 = vst.msk [vmem:[%s3 + $0x2a8] sm:$0xff] %vm122, %v2044
  %2153 = vst [vmem:[%s3 + $0x2b0] sm:$0xff] %v2045
  %2154 = vst.msk [vmem:[%s3 + $0x2b8] sm:$0xff] %vm122, %v2046
  %2155 = vst [vmem:[%s3 + $0x2c0] sm:$0xff] %v2047
  %2156 = vst.msk [vmem:[%s3 + $0x2c8] sm:$0xff] %vm122, %v2048
  %2157 = vst [vmem:[%s3 + $0x2d0] sm:$0xff] %v2049
  %2158 = vst.msk [vmem:[%s3 + $0x2d8] sm:$0xff] %vm122, %v2050
  %2159 = vst [vmem:[%s3 + $0x2e0] sm:$0xff] %v2051
  %2160 = vst.msk [vmem:[%s3 + $0x2e8] sm:$0xff] %vm122, %v2052
  %2161 = vst [vmem:[%s3 + $0x2f0] sm:$0xff] %v2053
  %2162 = vst.msk [vmem:[%s3 + $0x2f8] sm:$0xff] %vm122, %v2054
  %2163 = vst [vmem:[%s3 + $0x300] sm:$0xff] %v2055
  %2164 = vst.msk [vmem:[%s3 + $0x308] sm:$0xff] %vm122, %v2056
  %2165 = vst [vmem:[%s3 + $0x310] sm:$0xff] %v2057
  %2166 = vst.msk [vmem:[%s3 + $0x318] sm:$0xff] %vm122, %v2058
  %2167 = vst [vmem:[%s3 + $0x320] sm:$0xff] %v2059
  %2168 = vst.msk [vmem:[%s3 + $0x328] sm:$0xff] %vm122, %v2060
  %2169 = vst [vmem:[%s3 + $0x330] sm:$0xff] %v2061
  %2170 = vst.msk [vmem:[%s3 + $0x338] sm:$0xff] %vm122, %v2062
  %2171 = vst [vmem:[%s3 + $0x340] sm:$0xff] %v2063
  %2172 = vst.msk [vmem:[%s3 + $0x348] sm:$0xff] %vm122, %v2064
  %2173 = vst [vmem:[%s3 + $0x350] sm:$0xff] %v2065
  %2174 = vst.msk [vmem:[%s3 + $0x358] sm:$0xff] %vm122, %v2066
  // Predicated region
  $region14: #{tpu_custom_call.1} parent=0 // pred_check
    _
  $region15: #{tpu_custom_call.1} parent=0 // pred_check_branch
    %2176 = sbr.rel (0) target = $region17
  $region16: #{tpu_custom_call.1} parent=0 // pred_region
    _
  $region17: #{tpu_custom_call.1} parent=0 // pred_fallthru
    _
  // Predicated region
  $region18: #{tpu_custom_call.1} parent=0 // pred_check
    _
  $region19: #{tpu_custom_call.1} parent=0 // pred_check_branch
    %2178 = sbr.rel (0) target = $region21
  $region20: #{tpu_custom_call.1} parent=0 // pred_region
    _
  $region21: #{tpu_custom_call.1} parent=0 // pred_fallthru
    _

</llo_original>
